<compile_context>
chip_gen: v5e
topology: v5e:2x2
jax: 0.10.0
libtpu: 0.0.40
codegen_flags: <defaults>
</compile_context>

<pallas_src>
import functools

import jax
import jax.numpy as jnp
import numpy as np
from jax import lax
from jax.experimental import pallas as pl
from jax.experimental.pallas import tpu as pltpu

HIDDEN = 32       # hidden_size (small test size; PyTorch script uses 256)
NUM_LAYERS = 2    # kernel structure is specialized to 2 layers (matches the module)
VOCAB = 32        # synthetic vocab (len(char_to_idx))
BATCH = 2
SEQ = 8


def _round_up(x, m):
    return ((x + m - 1) // m) * m


def _pick_chunk(T, max_chunk):
    """Largest divisor of T that is <= max_chunk, so the grid tiles T exactly."""
    tc = 1
    for d in range(1, min(T, max_chunk) + 1):
        if T % d == 0:
            tc = d
    return tc


# ------------------------- fused CharRNN forward kernel -----------------------
def _char_rnn_kernel(emb_ref, wih0_ref, b0_ref, wcomb_ref, b1_ref,
                     wfc_ref, bfc_ref, h0_ref, c0_ref,
                     logits_ref, hN_ref, cN_ref,
                     xg_scr, seq_scr, h0_scr, c0_scr, h1_scr, c1_scr,
                     *, Tc, H):
    chunk = pl.program_id(0)
    Bp = h0_scr.shape[0]
    H4 = 4 * H

    # Load the initial hidden state into the resident carries on chunk 0; on later
    # chunks the scratch carries already hold the state (scratch persists).
    @pl.when(chunk == 0)
    def _():
        h0_scr[...] = h0_ref[0]
        c0_scr[...] = c0_ref[0]
        h1_scr[...] = h0_ref[1]
        c1_scr[...] = c0_ref[1]

    # Hoisted layer-0 input projection for the whole chunk: ONE bf16 MXU matmul.
    # (bias = b_ih + b_hh; i/f/o columns pre-scaled by 0.5 for the tanh-sigmoid form)
    xg_scr[...] = (jnp.dot(emb_ref[...], wih0_ref[...],
                           preferred_element_type=jnp.float32)
                   + b0_ref[...])

    def lstm_cell(tg, c_prev):
        # tg holds tanh(0.5*pre) for i/f/o (scale folded into weights) and tanh(pre) for g.
        i_g = 0.5 * (tg[:, 0 * H:1 * H] + 1.0)
        f_g = 0.5 * (tg[:, 1 * H:2 * H] + 1.0)
        g_g = tg[:, 2 * H:3 * H]
        o_g = 0.5 * (tg[:, 3 * H:4 * H] + 1.0)
        c_new = f_g * c_prev + i_g * g_g
        h_new = o_g * jnp.tanh(c_new)
        return h_new, c_new

    def recurrent_gates():
        # One latency-bound MXU matmul per pipeline step serving BOTH layers:
        #   [h0 | h1] @ [[W_hh0, W_ih1], [0, W_hh1]]  -> (Bp, 8H)
        hh = jnp.concatenate([h0_scr[...], h1_scr[...]], axis=1)
        return jnp.dot(hh, wcomb_ref[...], preferred_element_type=jnp.float32)

    # ---- prologue: layer-0 step 0 (layer 1 has nothing to consume yet) -------
    comb = recurrent_gates()
    tg0 = jnp.tanh(comb[:, :H4] + xg_scr[pl.ds(0, Bp), :])
    h0n, c0n = lstm_cell(tg0, c0_scr[...])
    h0_scr[...] = h0n
    c0_scr[...] = c0n

    # ---- steady state: iteration k = layer-0 step k + layer-1 step k-1 -------
    def body(k, carry):
        r = pl.multiple_of(k * Bp, Bp)
        rp = pl.multiple_of((k - 1) * Bp, Bp)
        comb = recurrent_gates()                       # uses h0[k-1], h1[k-2]
        tg0 = jnp.tanh(comb[:, :H4] + xg_scr[pl.ds(r, Bp), :])
        tg1 = jnp.tanh(comb[:, H4:] + b1_ref[...])
        h0n, c0n = lstm_cell(tg0, c0_scr[...])
        h1n, c1n = lstm_cell(tg1, c1_scr[...])
        h0_scr[...] = h0n
        c0_scr[...] = c0n
        h1_scr[...] = h1n
        c1_scr[...] = c1n
        seq_scr[pl.ds(rp, Bp), :] = h1n                # layer-1 output, step k-1
        return carry

    unroll = True if Tc <= 32 else 8
    lax.fori_loop(1, Tc, body, 0, unroll=unroll)

    # ---- epilogue: drain layer-1 step Tc-1 ------------------------------------
    comb = recurrent_gates()                           # uses h0[Tc-1], h1[Tc-2]
    tg1 = jnp.tanh(comb[:, H4:] + b1_ref[...])
    h1n, c1n = lstm_cell(tg1, c1_scr[...])
    h1_scr[...] = h1n
    c1_scr[...] = c1n
    seq_scr[pl.ds((Tc - 1) * Bp, Bp), :] = h1n

    # ---- FC over the whole chunk: one bf16 MXU matmul, lane-dense output -----
    logits_ref[...] = (jnp.dot(seq_scr[...].astype(jnp.bfloat16), wfc_ref[...],
                               preferred_element_type=jnp.float32)
                       + bfc_ref[...])

    # Final hidden/cell state; constant out-spec => stays resident, one HBM
    # writeback after the last chunk (last chunk's value wins).
    hN_ref[0] = h0_scr[...]
    hN_ref[1] = h1_scr[...]
    cN_ref[0] = c0_scr[...]
    cN_ref[1] = c1_scr[...]


def _char_rnn_call(emb2d, wih0, b0, w_comb, b1, wfc, bfc, h0, c0,
                   *, Tc, Bp, H, Vp):
    TB = emb2d.shape[0]
    T = TB // Bp
    n_chunks = T // Tc
    rows = Tc * Bp
    H4, H8 = 4 * H, 8 * H
    L = h0.shape[0]

    def const(shape):
        return pl.BlockSpec(shape, lambda t, _n=len(shape): (0,) * _n)

    kernel = functools.partial(_char_rnn_kernel, Tc=Tc, H=H)

    out_shapes = (
        jax.ShapeDtypeStruct((TB, Vp), jnp.float32),     # logits (time-major, padded)
        jax.ShapeDtypeStruct((L, Bp, H), jnp.float32),   # h_N
        jax.ShapeDtypeStruct((L, Bp, H), jnp.float32),   # c_N
    )

    # Per-chunk VMEM working set (grid-blocked operands double-buffered).
    vmem_est = (2 * rows * H * 2          # emb chunk (bf16) x2 buffers
                + 2 * rows * Vp * 4       # logits chunk x2 buffers
                + rows * H4 * 4           # xg scratch
                + rows * H * 4            # layer-1 hidden sequence scratch
                + H * H4 * 2 + 2 * H * H8 * 4 + H * Vp * 2   # weights
                + 4 * Bp * H * 4          # carries
                + 4 * L * Bp * H * 4      # h0/c0 in + hN/cN out
                + 2 * (H4 + Vp) * 4)      # biases
    vmem_limit = int(min(100 << 20, max(8 << 20, 2 * vmem_est)))

    return pl.pallas_call(
        kernel,
        out_shape=out_shapes,
        grid_spec=pltpu.PrefetchScalarGridSpec(
            num_scalar_prefetch=0,
            grid=(n_chunks,),
            in_specs=[
                pl.BlockSpec((rows, H), lambda t: (t, 0)),   # emb chunk (bf16)
                const((H, H4)),          # layer-0 W_ih (bf16, scaled)
                const((1, H4)),          # layer-0 bias (f32, scaled)
                const((2 * H, H8)),      # combined recurrent block matrix (f32)
                const((1, H4)),          # layer-1 bias (f32, scaled)
                const((H, Vp)),          # fc W (bf16, vocab-padded)
                const((1, Vp)),          # fc b (f32)
                const((L, Bp, H)),       # h0
                const((L, Bp, H)),       # c0
            ],
            out_specs=[
                pl.BlockSpec((rows, Vp), lambda t: (t, 0)),  # logits chunk
                const((L, Bp, H)),
                const((L, Bp, H)),
            ],
            scratch_shapes=[
                pltpu.VMEM((rows, H4), jnp.float32),  # hoisted layer-0 x-gates
                pltpu.VMEM((rows, H), jnp.float32),   # layer-1 hidden sequence
                pltpu.VMEM((Bp, H), jnp.float32),     # h carry, layer 0
                pltpu.VMEM((Bp, H), jnp.float32),     # c carry, layer 0
                pltpu.VMEM((Bp, H), jnp.float32),     # h carry, layer 1
                pltpu.VMEM((Bp, H), jnp.float32),     # c carry, layer 1
            ],
        ),
        compiler_params=pltpu.CompilerParams(
            dimension_semantics=("arbitrary",),       # time axis carries the recurrence
            vmem_limit_bytes=vmem_limit),
    )(emb2d, wih0, b0, w_comb, b1, wfc, bfc, h0, c0)


# ------------------------------ model wrapper ---------------------------------
def init_params(key):
    """Deterministic synthetic parameters (PyTorch-style uniform init)."""
    k = 1.0 / np.sqrt(HIDDEN)
    keys = jax.random.split(key, 3 + 3 * NUM_LAYERS)
    params = {
        "embedding": jax.random.uniform(keys[0], (VOCAB, HIDDEN),
                                        jnp.float32, -k, k),
        "fc_w": jax.random.uniform(keys[1], (HIDDEN, VOCAB),
                                   jnp.float32, -k, k),
        "fc_b": jax.random.uniform(keys[2], (VOCAB,), jnp.float32, -k, k),
    }
    for l in range(NUM_LAYERS):
        params[f"w_ih_{l}"] = jax.random.uniform(
            keys[3 + 3 * l], (HIDDEN, 4 * HIDDEN), jnp.float32, -k, k)
        params[f"w_hh_{l}"] = jax.random.uniform(
            keys[4 + 3 * l], (HIDDEN, 4 * HIDDEN), jnp.float32, -k, k)
        # combined bias (b_ih + b_hh), kept 2D for TPU layout
        params[f"b_{l}"] = jax.random.uniform(
            keys[5 + 3 * l], (1, 4 * HIDDEN), jnp.float32, -2 * k, 2 * k)
    return params


def char_rnn_forward(params, x_tokens, hidden, *, max_chunk_len=256):
    """x_tokens: (B, T) int32; hidden: tuple of (num_layers, B, H)."""
    assert NUM_LAYERS == 2, "kernel is specialized to the module's 2 LSTM layers"
    B, T = x_tokens.shape
    H = HIDDEN
    V = params["fc_w"].shape[1]
    h0, c0 = hidden

    Bp = _round_up(B, 8)        # sublane alignment
    Vp = _round_up(V, 128)      # lane-dense FC/logits output
    Tc = _pick_chunk(T, max_chunk_len)

    # Embedding lookup (gather) is glue, done in plain JAX.
    emb = jnp.take(params["embedding"], x_tokens, axis=0)          # (B, T, H)
    emb = jnp.transpose(emb, (1, 0, 2))                            # (T, B, H)
    emb = jnp.pad(emb, ((0, 0), (0, Bp - B), (0, 0)))              # (T, Bp, H)
    emb2d = emb.reshape(T * Bp, H).astype(jnp.bfloat16)            # bf16 MXU operand

    h0_p = jnp.pad(h0, ((0, 0), (0, Bp - B), (0, 0))).astype(jnp.float32)
    c0_p = jnp.pad(c0, ((0, 0), (0, Bp - B), (0, 0))).astype(jnp.float32)

    # Fold the 0.5 input scale of sigmoid(x) = 0.5*(tanh(x/2)+1) into the
    # i/f/o gate columns (gate order [i, f, g, o]).
    scale = jnp.concatenate([
        jnp.full((2 * H,), 0.5, jnp.float32),   # i, f
        jnp.ones((H,), jnp.float32),            # g (tanh gate, unscaled)
        jnp.full((H,), 0.5, jnp.float32),       # o
    ])[None, :]

    wih0 = (params["w_ih_0"] * scale).astype(jnp.bfloat16)
    b0 = (params["b_0"] * scale).astype(jnp.float32)
    whh0 = (params["w_hh_0"] * scale).astype(jnp.float32)
    wih1 = (params["w_ih_1"] * scale).astype(jnp.float32)
    whh1 = (params["w_hh_1"] * scale).astype(jnp.float32)
    b1 = (params["b_1"] * scale).astype(jnp.float32)

    # Block matrix so ONE per-step MXU matmul serves both layers:
    #   [h0 | h1] @ [[W_hh0, W_ih1], [0, W_hh1]]
    w_comb = jnp.concatenate([
        jnp.concatenate([whh0, wih1], axis=1),
        jnp.concatenate([jnp.zeros((H, 4 * H), jnp.float32), whh1], axis=1),
    ], axis=0)                                                     # (2H, 8H)

    wfc = jnp.pad(params["fc_w"], ((0, 0), (0, Vp - V))).astype(jnp.bfloat16)
    bfc = jnp.pad(params["fc_b"], ((0, Vp - V),)).reshape(1, Vp).astype(jnp.float32)

    logits_p, hN_p, cN_p = _char_rnn_call(
        emb2d, wih0, b0, w_comb, b1, wfc, bfc, h0_p, c0_p,
        Tc=Tc, Bp=Bp, H=H, Vp=Vp)

    # (T*Bp, Vp) time-major -> (B*T, V) batch-major (matches out.reshape(B*T, H) @ W^T).
    # TODO(synk): at production sizes write batch-major blocks directly from the
    # kernel (out_spec over (Bp, T, Vp)) to avoid this extra HBM round trip.
    logits = (logits_p.reshape(T, Bp, Vp)[:, :B, :V]
              .transpose(1, 0, 2).reshape(B * T, V))
    return logits, (hN_p[:, :B, :], cN_p[:, :B, :])


# ---------------------------- pure-JAX reference ------------------------------
def char_rnn_reference(params, x_tokens, hidden):
    h0_all, c0_all = hidden
    emb = jnp.take(params["embedding"], x_tokens, axis=0)
    x = jnp.transpose(emb, (1, 0, 2)).astype(jnp.float32)
    hs, cs = [], []
    for l in range(NUM_LAYERS):
        wih, whh, b = params[f"w_ih_{l}"], params[f"w_hh_{l}"], params[f"b_{l}"]

        def step(carry, xt):
            h, c = carry
            g = xt @ wih + h @ whh + b[0]
            i = jax.nn.sigmoid(g[:, :HIDDEN])
            f = jax.nn.sigmoid(g[:, HIDDEN:2 * HIDDEN])
            gg = jnp.tanh(g[:, 2 * HIDDEN:3 * HIDDEN])
            o = jax.nn.sigmoid(g[:, 3 * HIDDEN:])
            c2 = f * c + i * gg
            h2 = o * jnp.tanh(c2)
            return (h2, c2), h2

        (hl, cl), x = jax.lax.scan(step, (h0_all[l], c0_all[l]), x)
        hs.append(hl)
        cs.append(cl)
    out = jnp.transpose(x, (1, 0, 2)).reshape(-1, HIDDEN)
    logits = out @ params["fc_w"] + params["fc_b"]
    return logits, (jnp.stack(hs), jnp.stack(cs))


if __name__ == "__main__":
    key = jax.random.PRNGKey(0)
    kp, kx = jax.random.split(key)
    params = init_params(kp)

    x_tokens = jax.random.randint(kx, (BATCH, SEQ), 0, VOCAB, dtype=jnp.int32)
    h0 = jnp.zeros((NUM_LAYERS, BATCH, HIDDEN), jnp.float32)   # init_hidden
    c0 = jnp.zeros((NUM_LAYERS, BATCH, HIDDEN), jnp.float32)

    # max_chunk_len=4 -> 2 time-chunks over SEQ=8, exercising the chunked grid
    # and the cross-chunk carry path.
    logits, (h_n, c_n) = char_rnn_forward(params, x_tokens, (h0, c0),
                                          max_chunk_len=4)
    jax.block_until_ready((logits, h_n, c_n))

    ref_logits, (ref_h, ref_c) = char_rnn_reference(params, x_tokens, (h0, c0))
    assert logits.shape == (BATCH * SEQ, VOCAB)
    assert h_n.shape == (NUM_LAYERS, BATCH, HIDDEN)
    assert c_n.shape == (NUM_LAYERS, BATCH, HIDDEN)
    # Tolerances account for bf16 operands on the two big MXU matmuls.
    assert np.allclose(np.asarray(logits), np.asarray(ref_logits),
                       atol=1e-2, rtol=1e-2)
    assert np.allclose(np.asarray(h_n), np.asarray(ref_h), atol=1e-2, rtol=1e-2)
    assert np.allclose(np.asarray(c_n), np.asarray(ref_c), atol=1e-2, rtol=1e-2)

    print("KERNEL_OK")
</pallas_src>

<mosaic_0001>
module attributes {stable_mosaic.version = 11 : i64} {
  func.func @_char_rnn_kernel(%arg0: i32, %arg1: memref<32x32xbf16, #tpu.memory_space<vmem>>, %arg2: memref<32x128xbf16, #tpu.memory_space<vmem>>, %arg3: memref<1x128xf32, #tpu.memory_space<vmem>>, %arg4: memref<64x256xf32, #tpu.memory_space<vmem>>, %arg5: memref<1x128xf32, #tpu.memory_space<vmem>>, %arg6: memref<32x128xbf16, #tpu.memory_space<vmem>>, %arg7: memref<1x128xf32, #tpu.memory_space<vmem>>, %arg8: memref<2x8x32xf32, #tpu.memory_space<vmem>>, %arg9: memref<2x8x32xf32, #tpu.memory_space<vmem>>, %arg10: memref<32x128xf32, #tpu.memory_space<vmem>>, %arg11: memref<2x8x32xf32, #tpu.memory_space<vmem>>, %arg12: memref<2x8x32xf32, #tpu.memory_space<vmem>>, %arg13: memref<32x128xf32, #tpu.memory_space<vmem>>, %arg14: memref<32x32xf32, #tpu.memory_space<vmem>>, %arg15: memref<8x32xf32, #tpu.memory_space<vmem>>, %arg16: memref<8x32xf32, #tpu.memory_space<vmem>>, %arg17: memref<8x32xf32, #tpu.memory_space<vmem>>, %arg18: memref<8x32xf32, #tpu.memory_space<vmem>>) attributes {dimension_semantics = [#tpu.dimension_semantics<arbitrary>], iteration_bounds = array<i64: 2>, scalar_prefetch = 0 : i64, scratch_operands = 6 : i64, tpu.core_type = #tpu.core_type<tc>, window_params = [{transform_indices = @transform_0, window_bounds = array<i64: 32, 32>}, {pipeline_mode = #tpu.pipeline_mode<synchronous>, transform_indices = @transform_1, window_bounds = array<i64: 32, 128>}, {pipeline_mode = #tpu.pipeline_mode<synchronous>, transform_indices = @transform_2, window_bounds = array<i64: 1, 128>}, {pipeline_mode = #tpu.pipeline_mode<synchronous>, transform_indices = @transform_3, window_bounds = array<i64: 64, 256>}, {pipeline_mode = #tpu.pipeline_mode<synchronous>, transform_indices = @transform_4, window_bounds = array<i64: 1, 128>}, {pipeline_mode = #tpu.pipeline_mode<synchronous>, transform_indices = @transform_5, window_bounds = array<i64: 32, 128>}, {pipeline_mode = #tpu.pipeline_mode<synchronous>, transform_indices = @transform_6, window_bounds = array<i64: 1, 128>}, {pipeline_mode = #tpu.pipeline_mode<synchronous>, transform_indices = @transform_7, window_bounds = array<i64: 2, 8, 32>}, {pipeline_mode = #tpu.pipeline_mode<synchronous>, transform_indices = @transform_8, window_bounds = array<i64: 2, 8, 32>}, {transform_indices = @transform_9, window_bounds = array<i64: 32, 128>}, {pipeline_mode = #tpu.pipeline_mode<synchronous>, transform_indices = @transform_10, window_bounds = array<i64: 2, 8, 32>}, {pipeline_mode = #tpu.pipeline_mode<synchronous>, transform_indices = @transform_11, window_bounds = array<i64: 2, 8, 32>}]} {
    %c0_i32 = arith.constant 0 : i32
    %0 = arith.cmpi eq, %arg0, %c0_i32 : i32
    %1 = arith.extui %0 : i1 to i32
    %c0_i32_0 = arith.constant 0 : i32
    %2 = arith.cmpi ne, %1, %c0_i32_0 : i32
    scf.if %2 {
      %c0_193 = arith.constant 0 : index
      %c0_194 = arith.constant 0 : index
      %c0_195 = arith.constant 0 : index
      %312 = vector.load %arg8[%c0_193, %c0_194, %c0_195] : memref<2x8x32xf32, #tpu.memory_space<vmem>>, vector<1x8x32xf32>
      %313 = vector.shape_cast %312 : vector<1x8x32xf32> to vector<8x32xf32>
      %c0_196 = arith.constant 0 : index
      %c0_197 = arith.constant 0 : index
      %314 = vector.load %arg15[%c0_196, %c0_197] : memref<8x32xf32, #tpu.memory_space<vmem>>, vector<8x32xf32>
      tpu.vector_store %arg15[%c0_196, %c0_197], %313 {strides = array<i32>} : memref<8x32xf32, #tpu.memory_space<vmem>>, vector<8x32xf32>,
      %c0_198 = arith.constant 0 : index
      %c0_199 = arith.constant 0 : index
      %c0_200 = arith.constant 0 : index
      %315 = vector.load %arg9[%c0_198, %c0_199, %c0_200] : memref<2x8x32xf32, #tpu.memory_space<vmem>>, vector<1x8x32xf32>
      %316 = vector.shape_cast %315 : vector<1x8x32xf32> to vector<8x32xf32>
      %c0_201 = arith.constant 0 : index
      %c0_202 = arith.constant 0 : index
      %317 = vector.load %arg16[%c0_201, %c0_202] : memref<8x32xf32, #tpu.memory_space<vmem>>, vector<8x32xf32>
      tpu.vector_store %arg16[%c0_201, %c0_202], %316 {strides = array<i32>} : memref<8x32xf32, #tpu.memory_space<vmem>>, vector<8x32xf32>,
      %c1_203 = arith.constant 1 : index
      %c0_204 = arith.constant 0 : index
      %c0_205 = arith.constant 0 : index
      %318 = vector.load %arg8[%c1_203, %c0_204, %c0_205] : memref<2x8x32xf32, #tpu.memory_space<vmem>>, vector<1x8x32xf32>
      %319 = vector.shape_cast %318 : vector<1x8x32xf32> to vector<8x32xf32>
      %c0_206 = arith.constant 0 : index
      %c0_207 = arith.constant 0 : index
      %320 = vector.load %arg17[%c0_206, %c0_207] : memref<8x32xf32, #tpu.memory_space<vmem>>, vector<8x32xf32>
      tpu.vector_store %arg17[%c0_206, %c0_207], %319 {strides = array<i32>} : memref<8x32xf32, #tpu.memory_space<vmem>>, vector<8x32xf32>,
      %c1_208 = arith.constant 1 : index
      %c0_209 = arith.constant 0 : index
      %c0_210 = arith.constant 0 : index
      %321 = vector.load %arg9[%c1_208, %c0_209, %c0_210] : memref<2x8x32xf32, #tpu.memory_space<vmem>>, vector<1x8x32xf32>
      %322 = vector.shape_cast %321 : vector<1x8x32xf32> to vector<8x32xf32>
      %c0_211 = arith.constant 0 : index
      %c0_212 = arith.constant 0 : index
      %323 = vector.load %arg18[%c0_211, %c0_212] : memref<8x32xf32, #tpu.memory_space<vmem>>, vector<8x32xf32>
      tpu.vector_store %arg18[%c0_211, %c0_212], %322 {strides = array<i32>} : memref<8x32xf32, #tpu.memory_space<vmem>>, vector<8x32xf32>,
    } else {
    }
    %c0 = arith.constant 0 : index
    %c0_1 = arith.constant 0 : index
    %3 = vector.load %arg1[%c0, %c0_1] : memref<32x32xbf16, #tpu.memory_space<vmem>>, vector<32x32xbf16>
    %c0_2 = arith.constant 0 : index
    %c0_3 = arith.constant 0 : index
    %4 = vector.load %arg2[%c0_2, %c0_3] : memref<32x128xbf16, #tpu.memory_space<vmem>>, vector<32x128xbf16>
    %cst = arith.constant dense<0.000000e+00> : vector<32x128xf32>
    %5 = tpu.matmul %3, %4, %cst {dimension_numbers = #tpu.dot_dimension_numbers<[1], [0], [0], [1], [0, 0, 1, 1], [], []>} : vector<32x32xbf16>, vector<32x128xbf16>, vector<32x128xf32> -> vector<32x128xf32>
    %c0_4 = arith.constant 0 : index
    %c0_5 = arith.constant 0 : index
    %6 = vector.load %arg3[%c0_4, %c0_5] : memref<1x128xf32, #tpu.memory_space<vmem>>, vector<1x128xf32>
    %7 = vector.broadcast %6 : vector<1x128xf32> to vector<32x128xf32>
    %8 = arith.addf %5, %7 : vector<32x128xf32>
    %c0_6 = arith.constant 0 : index
    %c0_7 = arith.constant 0 : index
    %9 = vector.load %arg13[%c0_6, %c0_7] : memref<32x128xf32, #tpu.memory_space<vmem>>, vector<32x128xf32>
    tpu.vector_store %arg13[%c0_6, %c0_7], %8 {strides = array<i32>} : memref<32x128xf32, #tpu.memory_space<vmem>>, vector<32x128xf32>,
    %c0_8 = arith.constant 0 : index
    %c0_9 = arith.constant 0 : index
    %10 = vector.load %arg15[%c0_8, %c0_9] : memref<8x32xf32, #tpu.memory_space<vmem>>, vector<8x32xf32>
    %c0_10 = arith.constant 0 : index
    %c0_11 = arith.constant 0 : index
    %11 = vector.load %arg17[%c0_10, %c0_11] : memref<8x32xf32, #tpu.memory_space<vmem>>, vector<8x32xf32>
    %12 = tpu.concatenate %10, %11 in 1 : vector<8x32xf32>, vector<8x32xf32> -> vector<8x64xf32>
    %c0_12 = arith.constant 0 : index
    %c0_13 = arith.constant 0 : index
    %13 = vector.load %arg4[%c0_12, %c0_13] : memref<64x256xf32, #tpu.memory_space<vmem>>, vector<64x256xf32>
    %cst_14 = arith.constant dense<0.000000e+00> : vector<8x256xf32>
    %14 = tpu.matmul %12, %13, %cst_14 {dimension_numbers = #tpu.dot_dimension_numbers<[1], [0], [0], [1], [0, 0, 1, 1], [], []>} : vector<8x64xf32>, vector<64x256xf32>, vector<8x256xf32> -> vector<8x256xf32>
    %15 = vector.extract_strided_slice %14 {offsets = [0, 0], sizes = [8, 128], strides = [1, 1]} : vector<8x256xf32> to vector<8x128xf32>
    %c0_15 = arith.constant 0 : index
    %c0_16 = arith.constant 0 : index
    %16 = vector.load %arg13[%c0_15, %c0_16] : memref<32x128xf32, #tpu.memory_space<vmem>>, vector<8x128xf32>
    %17 = arith.addf %15, %16 : vector<8x128xf32>
    %18 = math.tanh %17 : vector<8x128xf32>
    %c0_17 = arith.constant 0 : index
    %c0_18 = arith.constant 0 : index
    %19 = vector.load %arg16[%c0_17, %c0_18] : memref<8x32xf32, #tpu.memory_space<vmem>>, vector<8x32xf32>
    %20 = vector.extract_strided_slice %18 {offsets = [0, 0], sizes = [8, 32], strides = [1, 1]} : vector<8x128xf32> to vector<8x32xf32>
    %cst_19 = arith.constant 1.000000e+00 : f32
    %21 = vector.broadcast %cst_19 : f32 to vector<8x32xf32>
    %22 = arith.addf %20, %21 : vector<8x32xf32>
    %cst_20 = arith.constant 5.000000e-01 : f32
    %23 = vector.broadcast %cst_20 : f32 to vector<8x32xf32>
    %24 = arith.mulf %23, %22 : vector<8x32xf32>
    %25 = vector.extract_strided_slice %18 {offsets = [0, 32], sizes = [8, 32], strides = [1, 1]} : vector<8x128xf32> to vector<8x32xf32>
    %cst_21 = arith.constant 1.000000e+00 : f32
    %26 = vector.broadcast %cst_21 : f32 to vector<8x32xf32>
    %27 = arith.addf %25, %26 : vector<8x32xf32>
    %cst_22 = arith.constant 5.000000e-01 : f32
    %28 = vector.broadcast %cst_22 : f32 to vector<8x32xf32>
    %29 = arith.mulf %28, %27 : vector<8x32xf32>
    %30 = vector.extract_strided_slice %18 {offsets = [0, 64], sizes = [8, 32], strides = [1, 1]} : vector<8x128xf32> to vector<8x32xf32>
    %31 = vector.extract_strided_slice %18 {offsets = [0, 96], sizes = [8, 32], strides = [1, 1]} : vector<8x128xf32> to vector<8x32xf32>
    %cst_23 = arith.constant 1.000000e+00 : f32
    %32 = vector.broadcast %cst_23 : f32 to vector<8x32xf32>
    %33 = arith.addf %31, %32 : vector<8x32xf32>
    %cst_24 = arith.constant 5.000000e-01 : f32
    %34 = vector.broadcast %cst_24 : f32 to vector<8x32xf32>
    %35 = arith.mulf %34, %33 : vector<8x32xf32>
    %36 = arith.mulf %29, %19 : vector<8x32xf32>
    %37 = arith.mulf %24, %30 : vector<8x32xf32>
    %38 = arith.addf %36, %37 : vector<8x32xf32>
    %39 = math.tanh %38 : vector<8x32xf32>
    %40 = arith.mulf %35, %39 : vector<8x32xf32>
    %c0_25 = arith.constant 0 : index
    %c0_26 = arith.constant 0 : index
    %41 = vector.load %arg15[%c0_25, %c0_26] : memref<8x32xf32, #tpu.memory_space<vmem>>, vector<8x32xf32>
    tpu.vector_store %arg15[%c0_25, %c0_26], %40 {strides = array<i32>} : memref<8x32xf32, #tpu.memory_space<vmem>>, vector<8x32xf32>,
    %c0_27 = arith.constant 0 : index
    %c0_28 = arith.constant 0 : index
    %42 = vector.load %arg16[%c0_27, %c0_28] : memref<8x32xf32, #tpu.memory_space<vmem>>, vector<8x32xf32>
    tpu.vector_store %arg16[%c0_27, %c0_28], %38 {strides = array<i32>} : memref<8x32xf32, #tpu.memory_space<vmem>>, vector<8x32xf32>,
    %c1_i32 = arith.constant 1 : i32
    %c8_i32 = arith.constant 8 : i32
    %43 = arith.muli %c1_i32, %c8_i32 : i32
    %44 = tpu.assume_multiple %43, 8 : i32
    %c1_i32_29 = arith.constant 1 : i32
    %45 = arith.subi %c1_i32, %c1_i32_29 : i32
    %c8_i32_30 = arith.constant 8 : i32
    %46 = arith.muli %45, %c8_i32_30 : i32
    %47 = tpu.assume_multiple %46, 8 : i32
    %c0_31 = arith.constant 0 : index
    %c0_32 = arith.constant 0 : index
    %48 = vector.load %arg15[%c0_31, %c0_32] : memref<8x32xf32, #tpu.memory_space<vmem>>, vector<8x32xf32>
    %c0_33 = arith.constant 0 : index
    %c0_34 = arith.constant 0 : index
    %49 = vector.load %arg17[%c0_33, %c0_34] : memref<8x32xf32, #tpu.memory_space<vmem>>, vector<8x32xf32>
    %50 = tpu.concatenate %48, %49 in 1 : vector<8x32xf32>, vector<8x32xf32> -> vector<8x64xf32>
    %c0_35 = arith.constant 0 : index
    %c0_36 = arith.constant 0 : index
    %51 = vector.load %arg4[%c0_35, %c0_36] : memref<64x256xf32, #tpu.memory_space<vmem>>, vector<64x256xf32>
    %cst_37 = arith.constant dense<0.000000e+00> : vector<8x256xf32>
    %52 = tpu.matmul %50, %51, %cst_37 {dimension_numbers = #tpu.dot_dimension_numbers<[1], [0], [0], [1], [0, 0, 1, 1], [], []>} : vector<8x64xf32>, vector<64x256xf32>, vector<8x256xf32> -> vector<8x256xf32>
    %53 = vector.extract_strided_slice %52 {offsets = [0, 0], sizes = [8, 128], strides = [1, 1]} : vector<8x256xf32> to vector<8x128xf32>
    %54 = arith.index_cast %44 : i32 to index
    %c0_38 = arith.constant 0 : index
    %55 = vector.load %arg13[%54, %c0_38] : memref<32x128xf32, #tpu.memory_space<vmem>>, vector<8x128xf32>
    %56 = arith.addf %53, %55 : vector<8x128xf32>
    %57 = math.tanh %56 : vector<8x128xf32>
    %58 = vector.extract_strided_slice %52 {offsets = [0, 128], sizes = [8, 128], strides = [1, 1]} : vector<8x256xf32> to vector<8x128xf32>
    %c0_39 = arith.constant 0 : index
    %c0_40 = arith.constant 0 : index
    %59 = vector.load %arg5[%c0_39, %c0_40] : memref<1x128xf32, #tpu.memory_space<vmem>>, vector<1x128xf32>
    %60 = vector.broadcast %59 : vector<1x128xf32> to vector<8x128xf32>
    %61 = arith.addf %58, %60 : vector<8x128xf32>
    %62 = math.tanh %61 : vector<8x128xf32>
    %c0_41 = arith.constant 0 : index
    %c0_42 = arith.constant 0 : index
    %63 = vector.load %arg16[%c0_41, %c0_42] : memref<8x32xf32, #tpu.memory_space<vmem>>, vector<8x32xf32>
    %64 = vector.extract_strided_slice %57 {offsets = [0, 0], sizes = [8, 32], strides = [1, 1]} : vector<8x128xf32> to vector<8x32xf32>
    %cst_43 = arith.constant 1.000000e+00 : f32
    %65 = vector.broadcast %cst_43 : f32 to vector<8x32xf32>
    %66 = arith.addf %64, %65 : vector<8x32xf32>
    %cst_44 = arith.constant 5.000000e-01 : f32
    %67 = vector.broadcast %cst_44 : f32 to vector<8x32xf32>
    %68 = arith.mulf %67, %66 : vector<8x32xf32>
    %69 = vector.extract_strided_slice %57 {offsets = [0, 32], sizes = [8, 32], strides = [1, 1]} : vector<8x128xf32> to vector<8x32xf32>
    %cst_45 = arith.constant 1.000000e+00 : f32
    %70 = vector.broadcast %cst_45 : f32 to vector<8x32xf32>
    %71 = arith.addf %69, %70 : vector<8x32xf32>
    %cst_46 = arith.constant 5.000000e-01 : f32
    %72 = vector.broadcast %cst_46 : f32 to vector<8x32xf32>
    %73 = arith.mulf %72, %71 : vector<8x32xf32>
    %74 = vector.extract_strided_slice %57 {offsets = [0, 64], sizes = [8, 32], strides = [1, 1]} : vector<8x128xf32> to vector<8x32xf32>
    %75 = vector.extract_strided_slice %57 {offsets = [0, 96], sizes = [8, 32], strides = [1, 1]} : vector<8x128xf32> to vector<8x32xf32>
    %cst_47 = arith.constant 1.000000e+00 : f32
    %76 = vector.broadcast %cst_47 : f32 to vector<8x32xf32>
    %77 = arith.addf %75, %76 : vector<8x32xf32>
    %cst_48 = arith.constant 5.000000e-01 : f32
    %78 = vector.broadcast %cst_48 : f32 to vector<8x32xf32>
    %79 = arith.mulf %78, %77 : vector<8x32xf32>
    %80 = arith.mulf %73, %63 : vector<8x32xf32>
    %81 = arith.mulf %68, %74 : vector<8x32xf32>
    %82 = arith.addf %80, %81 : vector<8x32xf32>
    %83 = math.tanh %82 : vector<8x32xf32>
    %84 = arith.mulf %79, %83 : vector<8x32xf32>
    %c0_49 = arith.constant 0 : index
    %c0_50 = arith.constant 0 : index
    %85 = vector.load %arg18[%c0_49, %c0_50] : memref<8x32xf32, #tpu.memory_space<vmem>>, vector<8x32xf32>
    %86 = vector.extract_strided_slice %62 {offsets = [0, 0], sizes = [8, 32], strides = [1, 1]} : vector<8x128xf32> to vector<8x32xf32>
    %cst_51 = arith.constant 1.000000e+00 : f32
    %87 = vector.broadcast %cst_51 : f32 to vector<8x32xf32>
    %88 = arith.addf %86, %87 : vector<8x32xf32>
    %cst_52 = arith.constant 5.000000e-01 : f32
    %89 = vector.broadcast %cst_52 : f32 to vector<8x32xf32>
    %90 = arith.mulf %89, %88 : vector<8x32xf32>
    %91 = vector.extract_strided_slice %62 {offsets = [0, 32], sizes = [8, 32], strides = [1, 1]} : vector<8x128xf32> to vector<8x32xf32>
    %cst_53 = arith.constant 1.000000e+00 : f32
    %92 = vector.broadcast %cst_53 : f32 to vector<8x32xf32>
    %93 = arith.addf %91, %92 : vector<8x32xf32>
    %cst_54 = arith.constant 5.000000e-01 : f32
    %94 = vector.broadcast %cst_54 : f32 to vector<8x32xf32>
    %95 = arith.mulf %94, %93 : vector<8x32xf32>
    %96 = vector.extract_strided_slice %62 {offsets = [0, 64], sizes = [8, 32], strides = [1, 1]} : vector<8x128xf32> to vector<8x32xf32>
    %97 = vector.extract_strided_slice %62 {offsets = [0, 96], sizes = [8, 32], strides = [1, 1]} : vector<8x128xf32> to vector<8x32xf32>
    %cst_55 = arith.constant 1.000000e+00 : f32
    %98 = vector.broadcast %cst_55 : f32 to vector<8x32xf32>
    %99 = arith.addf %97, %98 : vector<8x32xf32>
    %cst_56 = arith.constant 5.000000e-01 : f32
    %100 = vector.broadcast %cst_56 : f32 to vector<8x32xf32>
    %101 = arith.mulf %100, %99 : vector<8x32xf32>
    %102 = arith.mulf %95, %85 : vector<8x32xf32>
    %103 = arith.mulf %90, %96 : vector<8x32xf32>
    %104 = arith.addf %102, %103 : vector<8x32xf32>
    %105 = math.tanh %104 : vector<8x32xf32>
    %106 = arith.mulf %101, %105 : vector<8x32xf32>
    %c0_57 = arith.constant 0 : index
    %c0_58 = arith.constant 0 : index
    %107 = vector.load %arg15[%c0_57, %c0_58] : memref<8x32xf32, #tpu.memory_space<vmem>>, vector<8x32xf32>
    tpu.vector_store %arg15[%c0_57, %c0_58], %84 {strides = array<i32>} : memref<8x32xf32, #tpu.memory_space<vmem>>, vector<8x32xf32>,
    %c0_59 = arith.constant 0 : index
    %c0_60 = arith.constant 0 : index
    %108 = vector.load %arg16[%c0_59, %c0_60] : memref<8x32xf32, #tpu.memory_space<vmem>>, vector<8x32xf32>
    tpu.vector_store %arg16[%c0_59, %c0_60], %82 {strides = array<i32>} : memref<8x32xf32, #tpu.memory_space<vmem>>, vector<8x32xf32>,
    %c0_61 = arith.constant 0 : index
    %c0_62 = arith.constant 0 : index
    %109 = vector.load %arg17[%c0_61, %c0_62] : memref<8x32xf32, #tpu.memory_space<vmem>>, vector<8x32xf32>
    tpu.vector_store %arg17[%c0_61, %c0_62], %106 {strides = array<i32>} : memref<8x32xf32, #tpu.memory_space<vmem>>, vector<8x32xf32>,
    %c0_63 = arith.constant 0 : index
    %c0_64 = arith.constant 0 : index
    %110 = vector.load %arg18[%c0_63, %c0_64] : memref<8x32xf32, #tpu.memory_space<vmem>>, vector<8x32xf32>
    tpu.vector_store %arg18[%c0_63, %c0_64], %104 {strides = array<i32>} : memref<8x32xf32, #tpu.memory_space<vmem>>, vector<8x32xf32>,
    %111 = arith.index_cast %47 : i32 to index
    %c0_65 = arith.constant 0 : index
    %112 = vector.load %arg14[%111, %c0_65] : memref<32x32xf32, #tpu.memory_space<vmem>>, vector<8x32xf32>
    tpu.vector_store %arg14[%111, %c0_65], %106 {strides = array<i32>} : memref<32x32xf32, #tpu.memory_space<vmem>>, vector<8x32xf32>,
    %c2_i32 = arith.constant 2 : i32
    %c8_i32_66 = arith.constant 8 : i32
    %113 = arith.muli %c2_i32, %c8_i32_66 : i32
    %114 = tpu.assume_multiple %113, 8 : i32
    %c1_i32_67 = arith.constant 1 : i32
    %115 = arith.subi %c2_i32, %c1_i32_67 : i32
    %c8_i32_68 = arith.constant 8 : i32
    %116 = arith.muli %115, %c8_i32_68 : i32
    %117 = tpu.assume_multiple %116, 8 : i32
    %c0_69 = arith.constant 0 : index
    %c0_70 = arith.constant 0 : index
    %118 = vector.load %arg15[%c0_69, %c0_70] : memref<8x32xf32, #tpu.memory_space<vmem>>, vector<8x32xf32>
    %c0_71 = arith.constant 0 : index
    %c0_72 = arith.constant 0 : index
    %119 = vector.load %arg17[%c0_71, %c0_72] : memref<8x32xf32, #tpu.memory_space<vmem>>, vector<8x32xf32>
    %120 = tpu.concatenate %118, %119 in 1 : vector<8x32xf32>, vector<8x32xf32> -> vector<8x64xf32>
    %c0_73 = arith.constant 0 : index
    %c0_74 = arith.constant 0 : index
    %121 = vector.load %arg4[%c0_73, %c0_74] : memref<64x256xf32, #tpu.memory_space<vmem>>, vector<64x256xf32>
    %cst_75 = arith.constant dense<0.000000e+00> : vector<8x256xf32>
    %122 = tpu.matmul %120, %121, %cst_75 {dimension_numbers = #tpu.dot_dimension_numbers<[1], [0], [0], [1], [0, 0, 1, 1], [], []>} : vector<8x64xf32>, vector<64x256xf32>, vector<8x256xf32> -> vector<8x256xf32>
    %123 = vector.extract_strided_slice %122 {offsets = [0, 0], sizes = [8, 128], strides = [1, 1]} : vector<8x256xf32> to vector<8x128xf32>
    %124 = arith.index_cast %114 : i32 to index
    %c0_76 = arith.constant 0 : index
    %125 = vector.load %arg13[%124, %c0_76] : memref<32x128xf32, #tpu.memory_space<vmem>>, vector<8x128xf32>
    %126 = arith.addf %123, %125 : vector<8x128xf32>
    %127 = math.tanh %126 : vector<8x128xf32>
    %128 = vector.extract_strided_slice %122 {offsets = [0, 128], sizes = [8, 128], strides = [1, 1]} : vector<8x256xf32> to vector<8x128xf32>
    %c0_77 = arith.constant 0 : index
    %c0_78 = arith.constant 0 : index
    %129 = vector.load %arg5[%c0_77, %c0_78] : memref<1x128xf32, #tpu.memory_space<vmem>>, vector<1x128xf32>
    %130 = vector.broadcast %129 : vector<1x128xf32> to vector<8x128xf32>
    %131 = arith.addf %128, %130 : vector<8x128xf32>
    %132 = math.tanh %131 : vector<8x128xf32>
    %c0_79 = arith.constant 0 : index
    %c0_80 = arith.constant 0 : index
    %133 = vector.load %arg16[%c0_79, %c0_80] : memref<8x32xf32, #tpu.memory_space<vmem>>, vector<8x32xf32>
    %134 = vector.extract_strided_slice %127 {offsets = [0, 0], sizes = [8, 32], strides = [1, 1]} : vector<8x128xf32> to vector<8x32xf32>
    %cst_81 = arith.constant 1.000000e+00 : f32
    %135 = vector.broadcast %cst_81 : f32 to vector<8x32xf32>
    %136 = arith.addf %134, %135 : vector<8x32xf32>
    %cst_82 = arith.constant 5.000000e-01 : f32
    %137 = vector.broadcast %cst_82 : f32 to vector<8x32xf32>
    %138 = arith.mulf %137, %136 : vector<8x32xf32>
    %139 = vector.extract_strided_slice %127 {offsets = [0, 32], sizes = [8, 32], strides = [1, 1]} : vector<8x128xf32> to vector<8x32xf32>
    %cst_83 = arith.constant 1.000000e+00 : f32
    %140 = vector.broadcast %cst_83 : f32 to vector<8x32xf32>
    %141 = arith.addf %139, %140 : vector<8x32xf32>
    %cst_84 = arith.constant 5.000000e-01 : f32
    %142 = vector.broadcast %cst_84 : f32 to vector<8x32xf32>
    %143 = arith.mulf %142, %141 : vector<8x32xf32>
    %144 = vector.extract_strided_slice %127 {offsets = [0, 64], sizes = [8, 32], strides = [1, 1]} : vector<8x128xf32> to vector<8x32xf32>
    %145 = vector.extract_strided_slice %127 {offsets = [0, 96], sizes = [8, 32], strides = [1, 1]} : vector<8x128xf32> to vector<8x32xf32>
    %cst_85 = arith.constant 1.000000e+00 : f32
    %146 = vector.broadcast %cst_85 : f32 to vector<8x32xf32>
    %147 = arith.addf %145, %146 : vector<8x32xf32>
    %cst_86 = arith.constant 5.000000e-01 : f32
    %148 = vector.broadcast %cst_86 : f32 to vector<8x32xf32>
    %149 = arith.mulf %148, %147 : vector<8x32xf32>
    %150 = arith.mulf %143, %133 : vector<8x32xf32>
    %151 = arith.mulf %138, %144 : vector<8x32xf32>
    %152 = arith.addf %150, %151 : vector<8x32xf32>
    %153 = math.tanh %152 : vector<8x32xf32>
    %154 = arith.mulf %149, %153 : vector<8x32xf32>
    %c0_87 = arith.constant 0 : index
    %c0_88 = arith.constant 0 : index
    %155 = vector.load %arg18[%c0_87, %c0_88] : memref<8x32xf32, #tpu.memory_space<vmem>>, vector<8x32xf32>
    %156 = vector.extract_strided_slice %132 {offsets = [0, 0], sizes = [8, 32], strides = [1, 1]} : vector<8x128xf32> to vector<8x32xf32>
    %cst_89 = arith.constant 1.000000e+00 : f32
    %157 = vector.broadcast %cst_89 : f32 to vector<8x32xf32>
    %158 = arith.addf %156, %157 : vector<8x32xf32>
    %cst_90 = arith.constant 5.000000e-01 : f32
    %159 = vector.broadcast %cst_90 : f32 to vector<8x32xf32>
    %160 = arith.mulf %159, %158 : vector<8x32xf32>
    %161 = vector.extract_strided_slice %132 {offsets = [0, 32], sizes = [8, 32], strides = [1, 1]} : vector<8x128xf32> to vector<8x32xf32>
    %cst_91 = arith.constant 1.000000e+00 : f32
    %162 = vector.broadcast %cst_91 : f32 to vector<8x32xf32>
    %163 = arith.addf %161, %162 : vector<8x32xf32>
    %cst_92 = arith.constant 5.000000e-01 : f32
    %164 = vector.broadcast %cst_92 : f32 to vector<8x32xf32>
    %165 = arith.mulf %164, %163 : vector<8x32xf32>
    %166 = vector.extract_strided_slice %132 {offsets = [0, 64], sizes = [8, 32], strides = [1, 1]} : vector<8x128xf32> to vector<8x32xf32>
    %167 = vector.extract_strided_slice %132 {offsets = [0, 96], sizes = [8, 32], strides = [1, 1]} : vector<8x128xf32> to vector<8x32xf32>
    %cst_93 = arith.constant 1.000000e+00 : f32
    %168 = vector.broadcast %cst_93 : f32 to vector<8x32xf32>
    %169 = arith.addf %167, %168 : vector<8x32xf32>
    %cst_94 = arith.constant 5.000000e-01 : f32
    %170 = vector.broadcast %cst_94 : f32 to vector<8x32xf32>
    %171 = arith.mulf %170, %169 : vector<8x32xf32>
    %172 = arith.mulf %165, %155 : vector<8x32xf32>
    %173 = arith.mulf %160, %166 : vector<8x32xf32>
    %174 = arith.addf %172, %173 : vector<8x32xf32>
    %175 = math.tanh %174 : vector<8x32xf32>
    %176 = arith.mulf %171, %175 : vector<8x32xf32>
    %c0_95 = arith.constant 0 : index
    %c0_96 = arith.constant 0 : index
    %177 = vector.load %arg15[%c0_95, %c0_96] : memref<8x32xf32, #tpu.memory_space<vmem>>, vector<8x32xf32>
    tpu.vector_store %arg15[%c0_95, %c0_96], %154 {strides = array<i32>} : memref<8x32xf32, #tpu.memory_space<vmem>>, vector<8x32xf32>,
    %c0_97 = arith.constant 0 : index
    %c0_98 = arith.constant 0 : index
    %178 = vector.load %arg16[%c0_97, %c0_98] : memref<8x32xf32, #tpu.memory_space<vmem>>, vector<8x32xf32>
    tpu.vector_store %arg16[%c0_97, %c0_98], %152 {strides = array<i32>} : memref<8x32xf32, #tpu.memory_space<vmem>>, vector<8x32xf32>,
    %c0_99 = arith.constant 0 : index
    %c0_100 = arith.constant 0 : index
    %179 = vector.load %arg17[%c0_99, %c0_100] : memref<8x32xf32, #tpu.memory_space<vmem>>, vector<8x32xf32>
    tpu.vector_store %arg17[%c0_99, %c0_100], %176 {strides = array<i32>} : memref<8x32xf32, #tpu.memory_space<vmem>>, vector<8x32xf32>,
    %c0_101 = arith.constant 0 : index
    %c0_102 = arith.constant 0 : index
    %180 = vector.load %arg18[%c0_101, %c0_102] : memref<8x32xf32, #tpu.memory_space<vmem>>, vector<8x32xf32>
    tpu.vector_store %arg18[%c0_101, %c0_102], %174 {strides = array<i32>} : memref<8x32xf32, #tpu.memory_space<vmem>>, vector<8x32xf32>,
    %181 = arith.index_cast %117 : i32 to index
    %c0_103 = arith.constant 0 : index
    %182 = vector.load %arg14[%181, %c0_103] : memref<32x32xf32, #tpu.memory_space<vmem>>, vector<8x32xf32>
    tpu.vector_store %arg14[%181, %c0_103], %176 {strides = array<i32>} : memref<32x32xf32, #tpu.memory_space<vmem>>, vector<8x32xf32>,
    %c3_i32 = arith.constant 3 : i32
    %c8_i32_104 = arith.constant 8 : i32
    %183 = arith.muli %c3_i32, %c8_i32_104 : i32
    %184 = tpu.assume_multiple %183, 8 : i32
    %c1_i32_105 = arith.constant 1 : i32
    %185 = arith.subi %c3_i32, %c1_i32_105 : i32
    %c8_i32_106 = arith.constant 8 : i32
    %186 = arith.muli %185, %c8_i32_106 : i32
    %187 = tpu.assume_multiple %186, 8 : i32
    %c0_107 = arith.constant 0 : index
    %c0_108 = arith.constant 0 : index
    %188 = vector.load %arg15[%c0_107, %c0_108] : memref<8x32xf32, #tpu.memory_space<vmem>>, vector<8x32xf32>
    %c0_109 = arith.constant 0 : index
    %c0_110 = arith.constant 0 : index
    %189 = vector.load %arg17[%c0_109, %c0_110] : memref<8x32xf32, #tpu.memory_space<vmem>>, vector<8x32xf32>
    %190 = tpu.concatenate %188, %189 in 1 : vector<8x32xf32>, vector<8x32xf32> -> vector<8x64xf32>
    %c0_111 = arith.constant 0 : index
    %c0_112 = arith.constant 0 : index
    %191 = vector.load %arg4[%c0_111, %c0_112] : memref<64x256xf32, #tpu.memory_space<vmem>>, vector<64x256xf32>
    %cst_113 = arith.constant dense<0.000000e+00> : vector<8x256xf32>
    %192 = tpu.matmul %190, %191, %cst_113 {dimension_numbers = #tpu.dot_dimension_numbers<[1], [0], [0], [1], [0, 0, 1, 1], [], []>} : vector<8x64xf32>, vector<64x256xf32>, vector<8x256xf32> -> vector<8x256xf32>
    %193 = vector.extract_strided_slice %192 {offsets = [0, 0], sizes = [8, 128], strides = [1, 1]} : vector<8x256xf32> to vector<8x128xf32>
    %194 = arith.index_cast %184 : i32 to index
    %c0_114 = arith.constant 0 : index
    %195 = vector.load %arg13[%194, %c0_114] : memref<32x128xf32, #tpu.memory_space<vmem>>, vector<8x128xf32>
    %196 = arith.addf %193, %195 : vector<8x128xf32>
    %197 = math.tanh %196 : vector<8x128xf32>
    %198 = vector.extract_strided_slice %192 {offsets = [0, 128], sizes = [8, 128], strides = [1, 1]} : vector<8x256xf32> to vector<8x128xf32>
    %c0_115 = arith.constant 0 : index
    %c0_116 = arith.constant 0 : index
    %199 = vector.load %arg5[%c0_115, %c0_116] : memref<1x128xf32, #tpu.memory_space<vmem>>, vector<1x128xf32>
    %200 = vector.broadcast %199 : vector<1x128xf32> to vector<8x128xf32>
    %201 = arith.addf %198, %200 : vector<8x128xf32>
    %202 = math.tanh %201 : vector<8x128xf32>
    %c0_117 = arith.constant 0 : index
    %c0_118 = arith.constant 0 : index
    %203 = vector.load %arg16[%c0_117, %c0_118] : memref<8x32xf32, #tpu.memory_space<vmem>>, vector<8x32xf32>
    %204 = vector.extract_strided_slice %197 {offsets = [0, 0], sizes = [8, 32], strides = [1, 1]} : vector<8x128xf32> to vector<8x32xf32>
    %cst_119 = arith.constant 1.000000e+00 : f32
    %205 = vector.broadcast %cst_119 : f32 to vector<8x32xf32>
    %206 = arith.addf %204, %205 : vector<8x32xf32>
    %cst_120 = arith.constant 5.000000e-01 : f32
    %207 = vector.broadcast %cst_120 : f32 to vector<8x32xf32>
    %208 = arith.mulf %207, %206 : vector<8x32xf32>
    %209 = vector.extract_strided_slice %197 {offsets = [0, 32], sizes = [8, 32], strides = [1, 1]} : vector<8x128xf32> to vector<8x32xf32>
    %cst_121 = arith.constant 1.000000e+00 : f32
    %210 = vector.broadcast %cst_121 : f32 to vector<8x32xf32>
    %211 = arith.addf %209, %210 : vector<8x32xf32>
    %cst_122 = arith.constant 5.000000e-01 : f32
    %212 = vector.broadcast %cst_122 : f32 to vector<8x32xf32>
    %213 = arith.mulf %212, %211 : vector<8x32xf32>
    %214 = vector.extract_strided_slice %197 {offsets = [0, 64], sizes = [8, 32], strides = [1, 1]} : vector<8x128xf32> to vector<8x32xf32>
    %215 = vector.extract_strided_slice %197 {offsets = [0, 96], sizes = [8, 32], strides = [1, 1]} : vector<8x128xf32> to vector<8x32xf32>
    %cst_123 = arith.constant 1.000000e+00 : f32
    %216 = vector.broadcast %cst_123 : f32 to vector<8x32xf32>
    %217 = arith.addf %215, %216 : vector<8x32xf32>
    %cst_124 = arith.constant 5.000000e-01 : f32
    %218 = vector.broadcast %cst_124 : f32 to vector<8x32xf32>
    %219 = arith.mulf %218, %217 : vector<8x32xf32>
    %220 = arith.mulf %213, %203 : vector<8x32xf32>
    %221 = arith.mulf %208, %214 : vector<8x32xf32>
    %222 = arith.addf %220, %221 : vector<8x32xf32>
    %223 = math.tanh %222 : vector<8x32xf32>
    %224 = arith.mulf %219, %223 : vector<8x32xf32>
    %c0_125 = arith.constant 0 : index
    %c0_126 = arith.constant 0 : index
    %225 = vector.load %arg18[%c0_125, %c0_126] : memref<8x32xf32, #tpu.memory_space<vmem>>, vector<8x32xf32>
    %226 = vector.extract_strided_slice %202 {offsets = [0, 0], sizes = [8, 32], strides = [1, 1]} : vector<8x128xf32> to vector<8x32xf32>
    %cst_127 = arith.constant 1.000000e+00 : f32
    %227 = vector.broadcast %cst_127 : f32 to vector<8x32xf32>
    %228 = arith.addf %226, %227 : vector<8x32xf32>
    %cst_128 = arith.constant 5.000000e-01 : f32
    %229 = vector.broadcast %cst_128 : f32 to vector<8x32xf32>
    %230 = arith.mulf %229, %228 : vector<8x32xf32>
    %231 = vector.extract_strided_slice %202 {offsets = [0, 32], sizes = [8, 32], strides = [1, 1]} : vector<8x128xf32> to vector<8x32xf32>
    %cst_129 = arith.constant 1.000000e+00 : f32
    %232 = vector.broadcast %cst_129 : f32 to vector<8x32xf32>
    %233 = arith.addf %231, %232 : vector<8x32xf32>
    %cst_130 = arith.constant 5.000000e-01 : f32
    %234 = vector.broadcast %cst_130 : f32 to vector<8x32xf32>
    %235 = arith.mulf %234, %233 : vector<8x32xf32>
    %236 = vector.extract_strided_slice %202 {offsets = [0, 64], sizes = [8, 32], strides = [1, 1]} : vector<8x128xf32> to vector<8x32xf32>
    %237 = vector.extract_strided_slice %202 {offsets = [0, 96], sizes = [8, 32], strides = [1, 1]} : vector<8x128xf32> to vector<8x32xf32>
    %cst_131 = arith.constant 1.000000e+00 : f32
    %238 = vector.broadcast %cst_131 : f32 to vector<8x32xf32>
    %239 = arith.addf %237, %238 : vector<8x32xf32>
    %cst_132 = arith.constant 5.000000e-01 : f32
    %240 = vector.broadcast %cst_132 : f32 to vector<8x32xf32>
    %241 = arith.mulf %240, %239 : vector<8x32xf32>
    %242 = arith.mulf %235, %225 : vector<8x32xf32>
    %243 = arith.mulf %230, %236 : vector<8x32xf32>
    %244 = arith.addf %242, %243 : vector<8x32xf32>
    %245 = math.tanh %244 : vector<8x32xf32>
    %246 = arith.mulf %241, %245 : vector<8x32xf32>
    %c0_133 = arith.constant 0 : index
    %c0_134 = arith.constant 0 : index
    %247 = vector.load %arg15[%c0_133, %c0_134] : memref<8x32xf32, #tpu.memory_space<vmem>>, vector<8x32xf32>
    tpu.vector_store %arg15[%c0_133, %c0_134], %224 {strides = array<i32>} : memref<8x32xf32, #tpu.memory_space<vmem>>, vector<8x32xf32>,
    %c0_135 = arith.constant 0 : index
    %c0_136 = arith.constant 0 : index
    %248 = vector.load %arg16[%c0_135, %c0_136] : memref<8x32xf32, #tpu.memory_space<vmem>>, vector<8x32xf32>
    tpu.vector_store %arg16[%c0_135, %c0_136], %222 {strides = array<i32>} : memref<8x32xf32, #tpu.memory_space<vmem>>, vector<8x32xf32>,
    %c0_137 = arith.constant 0 : index
    %c0_138 = arith.constant 0 : index
    %249 = vector.load %arg17[%c0_137, %c0_138] : memref<8x32xf32, #tpu.memory_space<vmem>>, vector<8x32xf32>
    tpu.vector_store %arg17[%c0_137, %c0_138], %246 {strides = array<i32>} : memref<8x32xf32, #tpu.memory_space<vmem>>, vector<8x32xf32>,
    %c0_139 = arith.constant 0 : index
    %c0_140 = arith.constant 0 : index
    %250 = vector.load %arg18[%c0_139, %c0_140] : memref<8x32xf32, #tpu.memory_space<vmem>>, vector<8x32xf32>
    tpu.vector_store %arg18[%c0_139, %c0_140], %244 {strides = array<i32>} : memref<8x32xf32, #tpu.memory_space<vmem>>, vector<8x32xf32>,
    %251 = arith.index_cast %187 : i32 to index
    %c0_141 = arith.constant 0 : index
    %252 = vector.load %arg14[%251, %c0_141] : memref<32x32xf32, #tpu.memory_space<vmem>>, vector<8x32xf32>
    tpu.vector_store %arg14[%251, %c0_141], %246 {strides = array<i32>} : memref<32x32xf32, #tpu.memory_space<vmem>>, vector<8x32xf32>,
    %c3_i32_142 = arith.constant 3 : i32
    %c0_143 = arith.constant 0 : index
    %c0_144 = arith.constant 0 : index
    %253 = vector.load %arg15[%c0_143, %c0_144] : memref<8x32xf32, #tpu.memory_space<vmem>>, vector<8x32xf32>
    %c0_145 = arith.constant 0 : index
    %c0_146 = arith.constant 0 : index
    %254 = vector.load %arg17[%c0_145, %c0_146] : memref<8x32xf32, #tpu.memory_space<vmem>>, vector<8x32xf32>
    %255 = tpu.concatenate %253, %254 in 1 : vector<8x32xf32>, vector<8x32xf32> -> vector<8x64xf32>
    %c0_147 = arith.constant 0 : index
    %c0_148 = arith.constant 0 : index
    %256 = vector.load %arg4[%c0_147, %c0_148] : memref<64x256xf32, #tpu.memory_space<vmem>>, vector<64x256xf32>
    %cst_149 = arith.constant dense<0.000000e+00> : vector<8x256xf32>
    %257 = tpu.matmul %255, %256, %cst_149 {dimension_numbers = #tpu.dot_dimension_numbers<[1], [0], [0], [1], [0, 0, 1, 1], [], []>} : vector<8x64xf32>, vector<64x256xf32>, vector<8x256xf32> -> vector<8x256xf32>
    %258 = vector.extract_strided_slice %257 {offsets = [0, 128], sizes = [8, 128], strides = [1, 1]} : vector<8x256xf32> to vector<8x128xf32>
    %c0_150 = arith.constant 0 : index
    %c0_151 = arith.constant 0 : index
    %259 = vector.load %arg5[%c0_150, %c0_151] : memref<1x128xf32, #tpu.memory_space<vmem>>, vector<1x128xf32>
    %260 = vector.broadcast %259 : vector<1x128xf32> to vector<8x128xf32>
    %261 = arith.addf %258, %260 : vector<8x128xf32>
    %262 = math.tanh %261 : vector<8x128xf32>
    %c0_152 = arith.constant 0 : index
    %c0_153 = arith.constant 0 : index
    %263 = vector.load %arg18[%c0_152, %c0_153] : memref<8x32xf32, #tpu.memory_space<vmem>>, vector<8x32xf32>
    %264 = vector.extract_strided_slice %262 {offsets = [0, 0], sizes = [8, 32], strides = [1, 1]} : vector<8x128xf32> to vector<8x32xf32>
    %cst_154 = arith.constant 1.000000e+00 : f32
    %265 = vector.broadcast %cst_154 : f32 to vector<8x32xf32>
    %266 = arith.addf %264, %265 : vector<8x32xf32>
    %cst_155 = arith.constant 5.000000e-01 : f32
    %267 = vector.broadcast %cst_155 : f32 to vector<8x32xf32>
    %268 = arith.mulf %267, %266 : vector<8x32xf32>
    %269 = vector.extract_strided_slice %262 {offsets = [0, 32], sizes = [8, 32], strides = [1, 1]} : vector<8x128xf32> to vector<8x32xf32>
    %cst_156 = arith.constant 1.000000e+00 : f32
    %270 = vector.broadcast %cst_156 : f32 to vector<8x32xf32>
    %271 = arith.addf %269, %270 : vector<8x32xf32>
    %cst_157 = arith.constant 5.000000e-01 : f32
    %272 = vector.broadcast %cst_157 : f32 to vector<8x32xf32>
    %273 = arith.mulf %272, %271 : vector<8x32xf32>
    %274 = vector.extract_strided_slice %262 {offsets = [0, 64], sizes = [8, 32], strides = [1, 1]} : vector<8x128xf32> to vector<8x32xf32>
    %275 = vector.extract_strided_slice %262 {offsets = [0, 96], sizes = [8, 32], strides = [1, 1]} : vector<8x128xf32> to vector<8x32xf32>
    %cst_158 = arith.constant 1.000000e+00 : f32
    %276 = vector.broadcast %cst_158 : f32 to vector<8x32xf32>
    %277 = arith.addf %275, %276 : vector<8x32xf32>
    %cst_159 = arith.constant 5.000000e-01 : f32
    %278 = vector.broadcast %cst_159 : f32 to vector<8x32xf32>
    %279 = arith.mulf %278, %277 : vector<8x32xf32>
    %280 = arith.mulf %273, %263 : vector<8x32xf32>
    %281 = arith.mulf %268, %274 : vector<8x32xf32>
    %282 = arith.addf %280, %281 : vector<8x32xf32>
    %283 = math.tanh %282 : vector<8x32xf32>
    %284 = arith.mulf %279, %283 : vector<8x32xf32>
    %c0_160 = arith.constant 0 : index
    %c0_161 = arith.constant 0 : index
    %285 = vector.load %arg17[%c0_160, %c0_161] : memref<8x32xf32, #tpu.memory_space<vmem>>, vector<8x32xf32>
    tpu.vector_store %arg17[%c0_160, %c0_161], %284 {strides = array<i32>} : memref<8x32xf32, #tpu.memory_space<vmem>>, vector<8x32xf32>,
    %c0_162 = arith.constant 0 : index
    %c0_163 = arith.constant 0 : index
    %286 = vector.load %arg18[%c0_162, %c0_163] : memref<8x32xf32, #tpu.memory_space<vmem>>, vector<8x32xf32>
    tpu.vector_store %arg18[%c0_162, %c0_163], %282 {strides = array<i32>} : memref<8x32xf32, #tpu.memory_space<vmem>>, vector<8x32xf32>,
    %c24 = arith.constant 24 : index
    %c0_164 = arith.constant 0 : index
    %287 = vector.load %arg14[%c24, %c0_164] : memref<32x32xf32, #tpu.memory_space<vmem>>, vector<8x32xf32>
    tpu.vector_store %arg14[%c24, %c0_164], %284 {strides = array<i32>} : memref<32x32xf32, #tpu.memory_space<vmem>>, vector<8x32xf32>,
    %c0_165 = arith.constant 0 : index
    %c0_166 = arith.constant 0 : index
    %288 = vector.load %arg14[%c0_165, %c0_166] : memref<32x32xf32, #tpu.memory_space<vmem>>, vector<32x32xf32>
    %289 = arith.truncf %288 : vector<32x32xf32> to vector<32x32xbf16>
    %c0_167 = arith.constant 0 : index
    %c0_168 = arith.constant 0 : index
    %290 = vector.load %arg6[%c0_167, %c0_168] : memref<32x128xbf16, #tpu.memory_space<vmem>>, vector<32x128xbf16>
    %cst_169 = arith.constant dense<0.000000e+00> : vector<32x128xf32>
    %291 = tpu.matmul %289, %290, %cst_169 {dimension_numbers = #tpu.dot_dimension_numbers<[1], [0], [0], [1], [0, 0, 1, 1], [], []>} : vector<32x32xbf16>, vector<32x128xbf16>, vector<32x128xf32> -> vector<32x128xf32>
    %c0_170 = arith.constant 0 : index
    %c0_171 = arith.constant 0 : index
    %292 = vector.load %arg7[%c0_170, %c0_171] : memref<1x128xf32, #tpu.memory_space<vmem>>, vector<1x128xf32>
    %293 = vector.broadcast %292 : vector<1x128xf32> to vector<32x128xf32>
    %294 = arith.addf %291, %293 : vector<32x128xf32>
    %c0_172 = arith.constant 0 : index
    %c0_173 = arith.constant 0 : index
    %295 = vector.load %arg10[%c0_172, %c0_173] : memref<32x128xf32, #tpu.memory_space<vmem>>, vector<32x128xf32>
    tpu.vector_store %arg10[%c0_172, %c0_173], %294 {strides = array<i32>} : memref<32x128xf32, #tpu.memory_space<vmem>>, vector<32x128xf32>,
    %c0_174 = arith.constant 0 : index
    %c0_175 = arith.constant 0 : index
    %296 = vector.load %arg15[%c0_174, %c0_175] : memref<8x32xf32, #tpu.memory_space<vmem>>, vector<8x32xf32>
    %c0_176 = arith.constant 0 : index
    %c0_177 = arith.constant 0 : index
    %c0_178 = arith.constant 0 : index
    %297 = vector.load %arg11[%c0_176, %c0_177, %c0_178] : memref<2x8x32xf32, #tpu.memory_space<vmem>>, vector<1x8x32xf32>
    %298 = vector.shape_cast %297 : vector<1x8x32xf32> to vector<8x32xf32>
    %299 = vector.shape_cast %296 : vector<8x32xf32> to vector<1x8x32xf32>
    tpu.vector_store %arg11[%c0_176, %c0_177, %c0_178], %299 {strides = array<i32>} : memref<2x8x32xf32, #tpu.memory_space<vmem>>, vector<1x8x32xf32>,
    %c0_179 = arith.constant 0 : index
    %c0_180 = arith.constant 0 : index
    %300 = vector.load %arg17[%c0_179, %c0_180] : memref<8x32xf32, #tpu.memory_space<vmem>>, vector<8x32xf32>
    %c1 = arith.constant 1 : index
    %c0_181 = arith.constant 0 : index
    %c0_182 = arith.constant 0 : index
    %301 = vector.load %arg11[%c1, %c0_181, %c0_182] : memref<2x8x32xf32, #tpu.memory_space<vmem>>, vector<1x8x32xf32>
    %302 = vector.shape_cast %301 : vector<1x8x32xf32> to vector<8x32xf32>
    %303 = vector.shape_cast %300 : vector<8x32xf32> to vector<1x8x32xf32>
    tpu.vector_store %arg11[%c1, %c0_181, %c0_182], %303 {strides = array<i32>} : memref<2x8x32xf32, #tpu.memory_space<vmem>>, vector<1x8x32xf32>,
    %c0_183 = arith.constant 0 : index
    %c0_184 = arith.constant 0 : index
    %304 = vector.load %arg16[%c0_183, %c0_184] : memref<8x32xf32, #tpu.memory_space<vmem>>, vector<8x32xf32>
    %c0_185 = arith.constant 0 : index
    %c0_186 = arith.constant 0 : index
    %c0_187 = arith.constant 0 : index
    %305 = vector.load %arg12[%c0_185, %c0_186, %c0_187] : memref<2x8x32xf32, #tpu.memory_space<vmem>>, vector<1x8x32xf32>
    %306 = vector.shape_cast %305 : vector<1x8x32xf32> to vector<8x32xf32>
    %307 = vector.shape_cast %304 : vector<8x32xf32> to vector<1x8x32xf32>
    tpu.vector_store %arg12[%c0_185, %c0_186, %c0_187], %307 {strides = array<i32>} : memref<2x8x32xf32, #tpu.memory_space<vmem>>, vector<1x8x32xf32>,
    %c0_188 = arith.constant 0 : index
    %c0_189 = arith.constant 0 : index
    %308 = vector.load %arg18[%c0_188, %c0_189] : memref<8x32xf32, #tpu.memory_space<vmem>>, vector<8x32xf32>
    %c1_190 = arith.constant 1 : index
    %c0_191 = arith.constant 0 : index
    %c0_192 = arith.constant 0 : index
    %309 = vector.load %arg12[%c1_190, %c0_191, %c0_192] : memref<2x8x32xf32, #tpu.memory_space<vmem>>, vector<1x8x32xf32>
    %310 = vector.shape_cast %309 : vector<1x8x32xf32> to vector<8x32xf32>
    %311 = vector.shape_cast %308 : vector<8x32xf32> to vector<1x8x32xf32>
    tpu.vector_store %arg12[%c1_190, %c0_191, %c0_192], %311 {strides = array<i32>} : memref<2x8x32xf32, #tpu.memory_space<vmem>>, vector<1x8x32xf32>,
    return
  }
  func.func @transform_0(%arg0: i32) -> (i32, i32) {
    %c0_i32 = arith.constant 0 : i32
    %c0_i32_0 = arith.constant 0 : i32
    return %arg0, %c0_i32 : i32, i32
  }
  func.func @transform_1(%arg0: i32) -> (i32, i32) {
    %c0_i32 = arith.constant 0 : i32
    %c0_i32_0 = arith.constant 0 : i32
    %c0_i32_1 = arith.constant 0 : i32
    return %c0_i32, %c0_i32_0 : i32, i32
  }
  func.func @transform_2(%arg0: i32) -> (i32, i32) {
    %c0_i32 = arith.constant 0 : i32
    %c0_i32_0 = arith.constant 0 : i32
    %c0_i32_1 = arith.constant 0 : i32
    return %c0_i32, %c0_i32_0 : i32, i32
  }
  func.func @transform_3(%arg0: i32) -> (i32, i32) {
    %c0_i32 = arith.constant 0 : i32
    %c0_i32_0 = arith.constant 0 : i32
    %c0_i32_1 = arith.constant 0 : i32
    return %c0_i32, %c0_i32_0 : i32, i32
  }
  func.func @transform_4(%arg0: i32) -> (i32, i32) {
    %c0_i32 = arith.constant 0 : i32
    %c0_i32_0 = arith.constant 0 : i32
    %c0_i32_1 = arith.constant 0 : i32
    return %c0_i32, %c0_i32_0 : i32, i32
  }
  func.func @transform_5(%arg0: i32) -> (i32, i32) {
    %c0_i32 = arith.constant 0 : i32
    %c0_i32_0 = arith.constant 0 : i32
    %c0_i32_1 = arith.constant 0 : i32
    return %c0_i32, %c0_i32_0 : i32, i32
  }
  func.func @transform_6(%arg0: i32) -> (i32, i32) {
    %c0_i32 = arith.constant 0 : i32
    %c0_i32_0 = arith.constant 0 : i32
    %c0_i32_1 = arith.constant 0 : i32
    return %c0_i32, %c0_i32_0 : i32, i32
  }
  func.func @transform_7(%arg0: i32) -> (i32, i32, i32) {
    %c0_i32 = arith.constant 0 : i32
    %c0_i32_0 = arith.constant 0 : i32
    %c0_i32_1 = arith.constant 0 : i32
    %c0_i32_2 = arith.constant 0 : i32
    return %c0_i32, %c0_i32_0, %c0_i32_1 : i32, i32, i32
  }
  func.func @transform_8(%arg0: i32) -> (i32, i32, i32) {
    %c0_i32 = arith.constant 0 : i32
    %c0_i32_0 = arith.constant 0 : i32
    %c0_i32_1 = arith.constant 0 : i32
    %c0_i32_2 = arith.constant 0 : i32
    return %c0_i32, %c0_i32_0, %c0_i32_1 : i32, i32, i32
  }
  func.func @transform_9(%arg0: i32) -> (i32, i32) {
    %c0_i32 = arith.constant 0 : i32
    %c0_i32_0 = arith.constant 0 : i32
    return %arg0, %c0_i32 : i32, i32
  }
  func.func @transform_10(%arg0: i32) -> (i32, i32, i32) {
    %c0_i32 = arith.constant 0 : i32
    %c0_i32_0 = arith.constant 0 : i32
    %c0_i32_1 = arith.constant 0 : i32
    %c0_i32_2 = arith.constant 0 : i32
    return %c0_i32, %c0_i32_0, %c0_i32_1 : i32, i32, i32
  }
  func.func @transform_11(%arg0: i32) -> (i32, i32, i32) {
    %c0_i32 = arith.constant 0 : i32
    %c0_i32_0 = arith.constant 0 : i32
    %c0_i32_1 = arith.constant 0 : i32
    %c0_i32_2 = arith.constant 0 : i32
    return %c0_i32, %c0_i32_0, %c0_i32_1 : i32, i32, i32
  }
}

</mosaic_0001>

<llo_original>
// kernel: tpu_custom_call.1
$region0: #{tpu_custom_call.1}
  #allocation0 [shape = 'u32[]', space=smem, size = 0x4, offset = 0x4, fixed_abs, tag = 'smem constant byte address 0x4 - core index']
  #allocation1 [shape = 'u32[72,128]{1,0:T(1,128)}', space=vmem, size = 0x9000, scoped, tag = 'internal scratch']
  #allocation2 [shape = 'f32[32,128]{1,0:T(8,128)}', space=vmem, size = 0x4000, scoped, tag = 'scratch operand']
  #allocation3 [shape = 'f32[32,32]{1,0:T(8,128)}', space=vmem, size = 0x4000, scoped, tag = 'scratch operand']
  #allocation4 [shape = 'f32[8,32]{1,0:T(8,128)}', space=vmem, size = 0x1000, scoped, tag = 'scratch operand']
  #allocation5 [shape = 'f32[8,32]{1,0:T(8,128)}', space=vmem, size = 0x1000, scoped, tag = 'scratch operand']
  #allocation6 [shape = 'f32[8,32]{1,0:T(8,128)}', space=vmem, size = 0x1000, scoped, tag = 'scratch operand']
  #allocation7 [shape = 'f32[8,32]{1,0:T(8,128)}', space=vmem, size = 0x1000, scoped, tag = 'scratch operand']
  %s0 = inlined_call_operand.vmem [shape: bf16[64,32], index: 0, kind: input, shape index: {}]
  %s1 = inlined_call_operand.vmem [shape: bf16[32,128], index: 1, kind: input, shape index: {}]
  %s2 = inlined_call_operand.vmem [shape: f32[1,128], index: 2, kind: input, shape index: {}]
  %s3 = inlined_call_operand.hbm [shape: f32[64,256], index: 3, kind: input, shape index: {}]
  %s4 = inlined_call_operand.vmem [shape: f32[1,128], index: 4, kind: input, shape index: {}]
  %s5 = inlined_call_operand.vmem [shape: bf16[32,128], index: 5, kind: input, shape index: {}]
  %s6 = inlined_call_operand.vmem [shape: f32[1,128], index: 6, kind: input, shape index: {}]
  %s7 = inlined_call_operand.vmem [shape: f32[2,8,32], index: 7, kind: input, shape index: {}]
  %s8 = inlined_call_operand.hbm [shape: f32[2,8,32], index: 8, kind: input, shape index: {}]
  %s9 = inlined_call_operand.hbm [shape: f32[64,128], index: 9, kind: output, shape index: {0}]
  %s10 = inlined_call_operand.hbm [shape: f32[2,8,32], index: 10, kind: output, shape index: {1}]
  %s11 = inlined_call_operand.hbm [shape: f32[2,8,32], index: 11, kind: output, shape index: {2}]
  %12 = xla_tuple %s9, %s10, %s11
  %s13 = sld [smem:[#allocation0]]
  $region97: #{tpu_custom_call.1} parent=0
    _
  %s15 = ssub.s32 1, %s13
  %s16 = scalar_select 0, %s15, %s13
  $region1: #{tpu_custom_call.1} parent=0
    #allocation8 [shape = 'u8[65536]{0}', space=vmem, size = 0x10000, scoped, tag = 'input window, operand 3, single buffered']
    #allocation9 [shape = 's32[2]{0}', space=sflag, size = 0x8, scoped, tag = 'scoped memory for tpu_custom_call.1']
    #allocation10 [shape = 's32[2]{0}', space=sflag, size = 0x8, scoped, tag = 'scoped memory for tpu_custom_call.1']
    #allocation11 [shape = 'u8[8192]{0}', space=vmem, size = 0x2000, scoped, tag = 'input window, operand 8, single buffered']
    #allocation12 [shape = 's32[1]{0}', space=sflag, size = 0x4, scoped, tag = 'scoped memory for tpu_custom_call.1']
    #allocation13 [shape = 'u8[32768]{0}', space=vmem, size = 0x8000, scoped, tag = 'output window, operand 0']
    #allocation14 [shape = 'u8[8192]{0}', space=vmem, size = 0x2000, scoped, tag = 'output window, operand 1, single buffered']
    #allocation15 [shape = 's32[1]{0}', space=sflag, size = 0x4, scoped, tag = 'scoped memory for tpu_custom_call.1']
    #allocation16 [shape = 'u8[8192]{0}', space=vmem, size = 0x2000, scoped, tag = 'output window, operand 2, single buffered']
    %17 = vsyncpa [#allocation9], 0
    %18 = vsyncpa [#allocation12], 0
    %19 = vsyncpa [#allocation10], 0
    %s20 = scalar_lea.sflag [#allocation10], 1
    %21 = vsyncpa %s20, 0
    %22 = vsyncpa [#allocation15], 0
    loop: start=0, step=1, limit=4
    $region2: #{tpu_custom_call.1} parent=1 // loop_pre_header
      _
    $region3: #{tpu_custom_call.1} parent=1 // loop_header
      %s24 = sphi 0, %s28
      %p25 = scmp.ge.s32.totalorder %s24, 4
      %s34 = sphi 0, %s36
      %s37 = sphi 0, %s34
      %s38 = sphi 0, %s37
      %s54 = sphi 0, %s38
      %s58 = sphi 0, %s58
      %s60 = sphi 0, %s58
      %s61 = sphi 0, %s60
      %s75 = sphi 0, %s61
      %s79 = sphi 0, %s79
      %s81 = sphi 0, %s79
      %s82 = sphi 0, %s81
      %s96 = sphi 0, %s82
      %s100 = sphi 0, %s100
      %s102 = sphi 0, %s100
      %s103 = sphi 0, %s102
      %s117 = sphi 0, %s103
      %s121 = sphi 0, %s121
      %s123 = sphi 0, %s121
      %s124 = sphi 0, %s123
      %s138 = sphi 0, %s124
      %s142 = sphi 0, %s142
      %s144 = sphi 0, %s142
      %s145 = sphi 0, %s144
      %s159 = sphi 0, %s145
      %s163 = sphi 0, %s163
      %s165 = sphi 0, %s163
      %s166 = sphi 0, %s165
      %s180 = sphi 0, %s166
      %s184 = sphi 0, %s184
      %s186 = sphi 0, %s184
      %s187 = sphi 0, %s186
      %s201 = sphi 0, %s187
      %s205 = sphi 0, %s205
      %s207 = sphi 0, %s205
      %s208 = sphi 0, %s207
      %s222 = sphi 0, %s208
      %s228 = sphi 0, %s230
      %s231 = sphi 0, %s228
      %s232 = sphi 0, %s231
      %s248 = sphi 0, %s232
      %s252 = sphi 0, %s252
      %s254 = sphi 0, %s252
      %s255 = sphi 0, %s254
      %s269 = sphi 0, %s255
      %s273 = sphi 0, %s273
      %s275 = sphi 0, %s273
      %s276 = sphi 0, %s275
      %s290 = sphi 0, %s276
    $region4: #{tpu_custom_call.1} parent=1 // loop_header_branch
      %27 = sbr.rel (%p25) target = $region8
    $region5: #{tpu_custom_call.1} parent=1 // loop_body
      %s29 = ssub.s32 %s24, 1
      %s30 = ssub.s32 %s24, 2
      %s31 = sadd.s32 %s24, 1
      %s32 = ssub.s32 %s24, %s31
      %p33 = scmp.eq.s32.totalorder %s32, 0
      %s35 = sadd.s32 %s34, 1
      %s36 = scalar_select %p33, %s34, %s35
      %p39 = pneg %p33
      %p40 = scmp.eq.s32.totalorder %s24, 1
      %p41 = por %p39, %p40
      %p42 = scmp.ne.s32.totalorder %s34, %s37
      %p43 = scmp.eq.s32.totalorder %s24, 0
      %p44 = por %p42, %p43
      %p45 = scmp.ne.s32.totalorder %s34, %s37
      %p46 = scmp.eq.s32.totalorder %s29, 1
      %p47 = por %p45, %p46
      %p48 = scmp.ne.s32.totalorder %s37, %s38
      %p49 = scmp.eq.s32.totalorder %s29, 0
      %p50 = por %p48, %p49
      %p51 = scmp.ne.s32.totalorder %s37, %s38
      %p52 = scmp.eq.s32.totalorder %s30, 1
      %p53 = por %p51, %p52
      %p55 = scmp.ne.s32.totalorder %s38, %s54
      %p56 = scmp.eq.s32.totalorder %s30, 0
      %p57 = por %p55, %p56
      %s59 = sadd.s32 %s58, 1
      %p62 = scmp.eq.s32.totalorder %s24, 1
      %p63 = scmp.ne.s32.totalorder %s58, %s60
      %p64 = scmp.eq.s32.totalorder %s24, 0
      %p65 = por %p63, %p64
      %p66 = scmp.ne.s32.totalorder %s58, %s60
      %p67 = scmp.eq.s32.totalorder %s29, 1
      %p68 = por %p66, %p67
      %p69 = scmp.ne.s32.totalorder %s60, %s61
      %p70 = scmp.eq.s32.totalorder %s29, 0
      %p71 = por %p69, %p70
      %p72 = scmp.ne.s32.totalorder %s60, %s61
      %p73 = scmp.eq.s32.totalorder %s30, 1
      %p74 = por %p72, %p73
      %p76 = scmp.ne.s32.totalorder %s61, %s75
      %p77 = scmp.eq.s32.totalorder %s30, 0
      %p78 = por %p76, %p77
      %s80 = sadd.s32 %s79, 1
      %p83 = scmp.eq.s32.totalorder %s24, 1
      %p84 = scmp.ne.s32.totalorder %s79, %s81
      %p85 = scmp.eq.s32.totalorder %s24, 0
      %p86 = por %p84, %p85
      %p87 = scmp.ne.s32.totalorder %s79, %s81
      %p88 = scmp.eq.s32.totalorder %s29, 1
      %p89 = por %p87, %p88
      %p90 = scmp.ne.s32.totalorder %s81, %s82
      %p91 = scmp.eq.s32.totalorder %s29, 0
      %p92 = por %p90, %p91
      %p93 = scmp.ne.s32.totalorder %s81, %s82
      %p94 = scmp.eq.s32.totalorder %s30, 1
      %p95 = por %p93, %p94
      %p97 = scmp.ne.s32.totalorder %s82, %s96
      %p98 = scmp.eq.s32.totalorder %s30, 0
      %p99 = por %p97, %p98
      %s101 = sadd.s32 %s100, 1
      %p104 = scmp.eq.s32.totalorder %s24, 1
      %p105 = scmp.ne.s32.totalorder %s100, %s102
      %p106 = scmp.eq.s32.totalorder %s24, 0
      %p107 = por %p105, %p106
      %p108 = scmp.ne.s32.totalorder %s100, %s102
      %p109 = scmp.eq.s32.totalorder %s29, 1
      %p110 = por %p108, %p109
      %p111 = scmp.ne.s32.totalorder %s102, %s103
      %p112 = scmp.eq.s32.totalorder %s29, 0
      %p113 = por %p111, %p112
      %p114 = scmp.ne.s32.totalorder %s102, %s103
      %p115 = scmp.eq.s32.totalorder %s30, 1
      %p116 = por %p114, %p115
      %p118 = scmp.ne.s32.totalorder %s103, %s117
      %p119 = scmp.eq.s32.totalorder %s30, 0
      %p120 = por %p118, %p119
      %s122 = sadd.s32 %s121, 1
      %p125 = scmp.eq.s32.totalorder %s24, 1
      %p126 = scmp.ne.s32.totalorder %s121, %s123
      %p127 = scmp.eq.s32.totalorder %s24, 0
      %p128 = por %p126, %p127
      %p129 = scmp.ne.s32.totalorder %s121, %s123
      %p130 = scmp.eq.s32.totalorder %s29, 1
      %p131 = por %p129, %p130
      %p132 = scmp.ne.s32.totalorder %s123, %s124
      %p133 = scmp.eq.s32.totalorder %s29, 0
      %p134 = por %p132, %p133
      %p135 = scmp.ne.s32.totalorder %s123, %s124
      %p136 = scmp.eq.s32.totalorder %s30, 1
      %p137 = por %p135, %p136
      %p139 = scmp.ne.s32.totalorder %s124, %s138
      %p140 = scmp.eq.s32.totalorder %s30, 0
      %p141 = por %p139, %p140
      %s143 = sadd.s32 %s142, 1
      %p146 = scmp.eq.s32.totalorder %s24, 1
      %p147 = scmp.ne.s32.totalorder %s142, %s144
      %p148 = scmp.eq.s32.totalorder %s24, 0
      %p149 = por %p147, %p148
      %p150 = scmp.ne.s32.totalorder %s142, %s144
      %p151 = scmp.eq.s32.totalorder %s29, 1
      %p152 = por %p150, %p151
      %p153 = scmp.ne.s32.totalorder %s144, %s145
      %p154 = scmp.eq.s32.totalorder %s29, 0
      %p155 = por %p153, %p154
      %p156 = scmp.ne.s32.totalorder %s144, %s145
      %p157 = scmp.eq.s32.totalorder %s30, 1
      %p158 = por %p156, %p157
      %p160 = scmp.ne.s32.totalorder %s145, %s159
      %p161 = scmp.eq.s32.totalorder %s30, 0
      %p162 = por %p160, %p161
      %s164 = sadd.s32 %s163, 1
      %p167 = scmp.eq.s32.totalorder %s24, 1
      %p168 = scmp.ne.s32.totalorder %s163, %s165
      %p169 = scmp.eq.s32.totalorder %s24, 0
      %p170 = por %p168, %p169
      %p171 = scmp.ne.s32.totalorder %s163, %s165
      %p172 = scmp.eq.s32.totalorder %s29, 1
      %p173 = por %p171, %p172
      %p174 = scmp.ne.s32.totalorder %s165, %s166
      %p175 = scmp.eq.s32.totalorder %s29, 0
      %p176 = por %p174, %p175
      %p177 = scmp.ne.s32.totalorder %s165, %s166
      %p178 = scmp.eq.s32.totalorder %s30, 1
      %p179 = por %p177, %p178
      %p181 = scmp.ne.s32.totalorder %s166, %s180
      %p182 = scmp.eq.s32.totalorder %s30, 0
      %p183 = por %p181, %p182
      %s185 = sadd.s32 %s184, 1
      %p188 = scmp.eq.s32.totalorder %s24, 1
      %p189 = scmp.ne.s32.totalorder %s184, %s186
      %p190 = scmp.eq.s32.totalorder %s24, 0
      %p191 = por %p189, %p190
      %p192 = scmp.ne.s32.totalorder %s184, %s186
      %p193 = scmp.eq.s32.totalorder %s29, 1
      %p194 = por %p192, %p193
      %p195 = scmp.ne.s32.totalorder %s186, %s187
      %p196 = scmp.eq.s32.totalorder %s29, 0
      %p197 = por %p195, %p196
      %p198 = scmp.ne.s32.totalorder %s186, %s187
      %p199 = scmp.eq.s32.totalorder %s30, 1
      %p200 = por %p198, %p199
      %p202 = scmp.ne.s32.totalorder %s187, %s201
      %p203 = scmp.eq.s32.totalorder %s30, 0
      %p204 = por %p202, %p203
      %s206 = sadd.s32 %s205, 1
      %p209 = scmp.eq.s32.totalorder %s24, 1
      %p210 = scmp.ne.s32.totalorder %s205, %s207
      %p211 = scmp.eq.s32.totalorder %s24, 0
      %p212 = por %p210, %p211
      %p213 = scmp.ne.s32.totalorder %s205, %s207
      %p214 = scmp.eq.s32.totalorder %s29, 1
      %p215 = por %p213, %p214
      %p216 = scmp.ne.s32.totalorder %s207, %s208
      %p217 = scmp.eq.s32.totalorder %s29, 0
      %p218 = por %p216, %p217
      %p219 = scmp.ne.s32.totalorder %s207, %s208
      %p220 = scmp.eq.s32.totalorder %s30, 1
      %p221 = por %p219, %p220
      %p223 = scmp.ne.s32.totalorder %s208, %s222
      %p224 = scmp.eq.s32.totalorder %s30, 0
      %p225 = por %p223, %p224
      %s226 = ssub.s32 %s24, %s31
      %p227 = scmp.eq.s32.totalorder %s226, 0
      %s229 = sadd.s32 %s228, 1
      %s230 = scalar_select %p227, %s228, %s229
      %p233 = pneg %p227
      %p234 = scmp.eq.s32.totalorder %s24, 1
      %p235 = por %p233, %p234
      %p236 = scmp.ne.s32.totalorder %s228, %s231
      %p237 = scmp.eq.s32.totalorder %s24, 0
      %p238 = por %p236, %p237
      %p239 = scmp.ne.s32.totalorder %s228, %s231
      %p240 = scmp.eq.s32.totalorder %s29, 1
      %p241 = por %p239, %p240
      %p242 = scmp.ne.s32.totalorder %s231, %s232
      %p243 = scmp.eq.s32.totalorder %s29, 0
      %p244 = por %p242, %p243
      %p245 = scmp.ne.s32.totalorder %s231, %s232
      %p246 = scmp.eq.s32.totalorder %s30, 1
      %p247 = por %p245, %p246
      %p249 = scmp.ne.s32.totalorder %s232, %s248
      %p250 = scmp.eq.s32.totalorder %s30, 0
      %p251 = por %p249, %p250
      %s253 = sadd.s32 %s252, 1
      %p256 = scmp.eq.s32.totalorder %s24, 1
      %p257 = scmp.ne.s32.totalorder %s252, %s254
      %p258 = scmp.eq.s32.totalorder %s24, 0
      %p259 = por %p257, %p258
      %p260 = scmp.ne.s32.totalorder %s252, %s254
      %p261 = scmp.eq.s32.totalorder %s29, 1
      %p262 = por %p260, %p261
      %p263 = scmp.ne.s32.totalorder %s254, %s255
      %p264 = scmp.eq.s32.totalorder %s29, 0
      %p265 = por %p263, %p264
      %p266 = scmp.ne.s32.totalorder %s254, %s255
      %p267 = scmp.eq.s32.totalorder %s30, 1
      %p268 = por %p266, %p267
      %p270 = scmp.ne.s32.totalorder %s255, %s269
      %p271 = scmp.eq.s32.totalorder %s30, 0
      %p272 = por %p270, %p271
      %s274 = sadd.s32 %s273, 1
      %p277 = scmp.eq.s32.totalorder %s24, 1
      %p278 = scmp.ne.s32.totalorder %s273, %s275
      %p279 = scmp.eq.s32.totalorder %s24, 0
      %p280 = por %p278, %p279
      %p281 = scmp.ne.s32.totalorder %s273, %s275
      %p282 = scmp.eq.s32.totalorder %s29, 1
      %p283 = por %p281, %p282
      %p284 = scmp.ne.s32.totalorder %s275, %s276
      %p285 = scmp.eq.s32.totalorder %s29, 0
      %p286 = por %p284, %p285
      %p287 = scmp.ne.s32.totalorder %s275, %s276
      %p288 = scmp.eq.s32.totalorder %s30, 1
      %p289 = por %p287, %p288
      %p291 = scmp.ne.s32.totalorder %s276, %s290
      %p292 = scmp.eq.s32.totalorder %s30, 0
      %p293 = por %p291, %p292
      %p294 = scmp.le.s32.totalorder 1, %s24
      %p295 = scmp.lt.s32.totalorder %s24, 3
      %p296 = pnand %p294, %p295
      %p297 = pneg %p296
      // Predicated region
      $region9: #{tpu_custom_call.1} parent=5 // pred_check
        _
      $region10: #{tpu_custom_call.1} parent=5 // pred_check_branch
        %299 = sbr.rel (%p296) target = $region12
      $region11: #{tpu_custom_call.1} parent=5 // pred_region
        %s300 = ssub.s32 %s24, 1
        // Predicated region
        $region13: #{tpu_custom_call.1} parent=11 // pred_check
          %p301 = pneg %p71
        $region14: #{tpu_custom_call.1} parent=11 // pred_check_branch
          %303 = sbr.rel (%p301) target = $region16
        $region15: #{tpu_custom_call.1} parent=11 // pred_region
          _
        $region16: #{tpu_custom_call.1} parent=11 // pred_fallthru
          _
        // Predicated region
        $region17: #{tpu_custom_call.1} parent=11 // pred_check
          %p304 = pneg %p92
        $region18: #{tpu_custom_call.1} parent=11 // pred_check_branch
          %306 = sbr.rel (%p304) target = $region20
        $region19: #{tpu_custom_call.1} parent=11 // pred_region
          _
        $region20: #{tpu_custom_call.1} parent=11 // pred_fallthru
          _
        // Predicated region
        $region21: #{tpu_custom_call.1} parent=11 // pred_check
          %p307 = pneg %p113
        $region22: #{tpu_custom_call.1} parent=11 // pred_check_branch
          %309 = sbr.rel (%p307) target = $region24
        $region23: #{tpu_custom_call.1} parent=11 // pred_region
          %311 = vsyncadd [#allocation9], 0
          %s312 = sshll.u32 %s3, 4
          %s313 = int_to_ptr.hbm [resolvable:$true] %s312
          %s314 = sshll.u32 [#allocation8], 4
          %s315 = int_to_ptr.vmem [resolvable:$true] %s314
          %320 = dma.hbm_to_vmem [thread:$0]  %s313, 2048, %s315, [#allocation9], 256, 256, 16
        $region24: #{tpu_custom_call.1} parent=11 // pred_fallthru
          _
        // Predicated region
        $region25: #{tpu_custom_call.1} parent=11 // pred_check
          %p321 = pneg %p134
        $region26: #{tpu_custom_call.1} parent=11 // pred_check_branch
          %323 = sbr.rel (%p321) target = $region28
        $region27: #{tpu_custom_call.1} parent=11 // pred_region
          _
        $region28: #{tpu_custom_call.1} parent=11 // pred_fallthru
          _
        // Predicated region
        $region29: #{tpu_custom_call.1} parent=11 // pred_check
          %p324 = pneg %p155
        $region30: #{tpu_custom_call.1} parent=11 // pred_check_branch
          %326 = sbr.rel (%p324) target = $region32
        $region31: #{tpu_custom_call.1} parent=11 // pred_region
          _
        $region32: #{tpu_custom_call.1} parent=11 // pred_fallthru
          _
        // Predicated region
        $region33: #{tpu_custom_call.1} parent=11 // pred_check
          %p327 = pneg %p176
        $region34: #{tpu_custom_call.1} parent=11 // pred_check_branch
          %329 = sbr.rel (%p327) target = $region36
        $region35: #{tpu_custom_call.1} parent=11 // pred_region
          _
        $region36: #{tpu_custom_call.1} parent=11 // pred_fallthru
          _
        // Predicated region
        $region37: #{tpu_custom_call.1} parent=11 // pred_check
          %p330 = pneg %p197
        $region38: #{tpu_custom_call.1} parent=11 // pred_check_branch
          %332 = sbr.rel (%p330) target = $region40
        $region39: #{tpu_custom_call.1} parent=11 // pred_region
          _
        $region40: #{tpu_custom_call.1} parent=11 // pred_fallthru
          _
        // Predicated region
        $region41: #{tpu_custom_call.1} parent=11 // pred_check
          %p333 = pneg %p218
        $region42: #{tpu_custom_call.1} parent=11 // pred_check_branch
          %335 = sbr.rel (%p333) target = $region44
        $region43: #{tpu_custom_call.1} parent=11 // pred_region
          %337 = vsyncadd [#allocation12], 0
          %s338 = sshll.u32 %s8, 4
          %s339 = int_to_ptr.hbm [resolvable:$true] %s338
          %s340 = sshll.u32 [#allocation11], 4
          %s341 = int_to_ptr.vmem [resolvable:$true] %s340
          %346 = dma.hbm_to_vmem [thread:$0]  %s339, 256, %s341, [#allocation12], 128, 128, 8
        $region44: #{tpu_custom_call.1} parent=11 // pred_fallthru
          _
      $region12: #{tpu_custom_call.1} parent=5 // pred_fallthru
        _
      %p347 = scmp.lt.s32.totalorder %s24, 2
      // Predicated region
      $region45: #{tpu_custom_call.1} parent=5 // pred_check
        %p348 = pneg %p347
      $region46: #{tpu_custom_call.1} parent=5 // pred_check_branch
        %350 = sbr.rel (%p348) target = $region48
      $region47: #{tpu_custom_call.1} parent=5 // pred_region
        // Predicated region
        $region49: #{tpu_custom_call.1} parent=47 // pred_check
          %p351 = pneg %p44
        $region50: #{tpu_custom_call.1} parent=47 // pred_check_branch
          %353 = sbr.rel (%p351) target = $region52
        $region51: #{tpu_custom_call.1} parent=47 // pred_region
          %s354 = smul.u32 4, %s24
          %p355 = scmp.lt.s32.totalorder %s354, 7
          %s356 = scalar_select %p355, %s354, 7
          %s357 = smul.addr %s356, 4
          %s358 = scalar_lea.vmem %s0, %s357
          %s359 = smul.u32 4, %s24
        $region52: #{tpu_custom_call.1} parent=47 // pred_fallthru
          _
      $region48: #{tpu_custom_call.1} parent=5 // pred_fallthru
        _
      %p360 = scmp.le.s32.totalorder 1, %s24
      %p361 = scmp.lt.s32.totalorder %s24, 3
      %p362 = pnand %p360, %p361
      %p363 = pneg %p362
      // Predicated region
      $region53: #{tpu_custom_call.1} parent=5 // pred_check
        _
      $region54: #{tpu_custom_call.1} parent=5 // pred_check_branch
        %365 = sbr.rel (%p362) target = $region56
      $region55: #{tpu_custom_call.1} parent=5 // pred_region
        %s366 = ssub.s32 %s24, 1
        // Predicated region
        $region57: #{tpu_custom_call.1} parent=55 // pred_check
          %p367 = pneg %p113
        $region58: #{tpu_custom_call.1} parent=55 // pred_check_branch
          %369 = sbr.rel (%p367) target = $region60
        $region59: #{tpu_custom_call.1} parent=55 // pred_region
          %371 = dma.done [#allocation9], 2048
        $region60: #{tpu_custom_call.1} parent=55 // pred_fallthru
          _
        // Predicated region
        $region61: #{tpu_custom_call.1} parent=55 // pred_check
          %p372 = pneg %p218
        $region62: #{tpu_custom_call.1} parent=55 // pred_check_branch
          %374 = sbr.rel (%p372) target = $region64
        $region63: #{tpu_custom_call.1} parent=55 // pred_region
          %376 = dma.done [#allocation12], 256
        $region64: #{tpu_custom_call.1} parent=55 // pred_fallthru
          _
        %s377 = smul.u32 4, %s29
        %p378 = scmp.lt.s32.totalorder %s377, 7
        %s379 = scalar_select %p378, %s377, 7
        %s380 = smul.addr %s379, 4
        %s381 = scalar_lea.vmem %s0, %s380
        %p382 = pneg %p50
        %p383 = pneg %p47
        %p384 = pneg %p71
        %p385 = pneg %p68
        %p386 = pneg %p92
        %p387 = pneg %p89
        %p388 = pneg %p113
        %p389 = pneg %p110
        %p390 = pneg %p134
        %p391 = pneg %p131
        %p392 = pneg %p155
        %p393 = pneg %p152
        %p394 = pneg %p176
        %p395 = pneg %p173
        %p396 = pneg %p197
        %p397 = pneg %p194
        %p398 = pneg %p218
        %p399 = pneg %p215
        %p400 = pneg %p244
        %p401 = pneg %p241
        %s402 = sand.u32 %s231, 1
        %s403 = scalar_lea.sflag [#allocation10], %s402
        %s404 = sand.u32 %s231, 1
        %s405 = smul.addr %s404, 32
        %s406 = scalar_lea.vmem [#allocation13], %s405
        %p407 = pneg %p265
        %p408 = pneg %p262
        %p409 = pneg %p286
        %p410 = pneg %p283
        %s411 = smul.u32 4, %s29
        %p412 = scmp.lt.s32.totalorder %s411, 7
        %s413 = scalar_select %p412, %s411, 7
        %s414 = smul.addr %s413, 4
        %s415 = scalar_lea.vmem %s0, %s414
        %s416 = smul.u32 4, %s29
        %s417 = smul.u32 4, %s29
        %p419 = scmp.eq.s32.totalorder %s29, 0
        // Predicated region
        $region65: #{tpu_custom_call.1} parent=55 // pred_check
          %p420 = pneg %p419
        $region66: #{tpu_custom_call.1} parent=55 // pred_check_branch
          %422 = sbr.rel (%p420) target = $region68
        $region67: #{tpu_custom_call.1} parent=55 // pred_region
          %v423 = vld [vmem:[%s7] sm:$0xff]
          %vm424 = vcmask 261120
          %425 = vst.msk [vmem:[#allocation4] sm:$0xff] %vm424, %v423
          %v426 = vld [vmem:[#allocation11] sm:$0xff]
          %427 = vst.msk [vmem:[#allocation5] sm:$0xff] %vm424, %v426
          %s428 = scalar_lea.vmem %s7, 8
          %v429 = vld [vmem:[%s428] sm:$0xff]
          %430 = vst.msk [vmem:[#allocation6] sm:$0xff] %vm424, %v429
          %s431 = scalar_lea.vmem [#allocation11], 8
          %v432 = vld [vmem:[%s431] sm:$0xff]
          %433 = vst.msk [vmem:[#allocation7] sm:$0xff] %vm424, %v432
        $region68: #{tpu_custom_call.1} parent=55 // pred_fallthru
          _
        %v434 = vld [vmem:[%s415] sm:$0xf]
        %v435 = vld [vmem:[%s415 + $0x4] sm:$0xf]
        %v436 = vld [vmem:[%s415 + $0x8] sm:$0xf]
        %v437 = vld [vmem:[%s415 + $0xc] sm:$0xf]
        %v438 = vld [vmem:[%s1] sm:$0xf]
        %v439 = vld [vmem:[%s1 + $0x4] sm:$0xf]
        %v440 = vld [vmem:[%s1 + $0x8] sm:$0xf]
        %v441 = vld [vmem:[%s1 + $0xc] sm:$0xf]
        %v442 = vld [vmem:[%s2] sm:$0x1]
        %v444 = vperm.slane %v442, 0
        %v450 = vunpack.c.l.b16 %v434
        %v451 = vunpack.c.l.b16 %v435
        %v452 = vunpack.c.l.b16 %v436
        %v453 = vunpack.c.l.b16 %v437
        %v454 = vpack.c.b16 %v451, %v450
        %v455 = vpack.c.b16 %v453, %v452
        %v460 = vunpack.c.l.b16 %v438
        %v461 = vunpack.c.l.b16 %v439
        %v462 = vunpack.c.l.b16 %v440
        %v463 = vunpack.c.l.b16 %v441
        %v464 = vpack.c.b16 %v461, %v460
        %v465 = vpack.c.b16 %v463, %v462
        %vm468 = vcmask 261120
        %v470 = vsel %vm468, %v454, 0
        %v473 = vsel %vm468, %v455, 0
        %475 = vmatpush.bf16.msra.mxu0 0
        %476 = vmatpush.bf16.msra.mxu0 0
        %477 = vmatpush.bf16.msra.mxu0 0
        %478 = vmatpush.bf16.msra.mxu0 0
        %479 = vmatpush.bf16.msra.mxu0 0
        %480 = vmatpush.bf16.msra.mxu0 0
        %481 = vmatpush.bf16.msra.mxu0 %v465
        %482 = vmatpush.bf16.msra.mxu0 %v464
        %483 = vmatmul.bf16.gmra.mxu0 %v470
        %v484 = vpop.f32.mrf.mxu0
        %v485 = vadd.f32 %v444, %v484
        %v486 = vpop.f32.mrf.mxu0
        %v487 = vadd.f32 %v444, %v486
        %488 = vmatmul.bf16.gmra.mxu0 %v473
        %v489 = vpop.f32.mrf.mxu0
        %v490 = vadd.f32 %v444, %v489
        %v491 = vpop.f32.mrf.mxu0
        %v492 = vadd.f32 %v444, %v491
        %493 = vdwg.mxu0
        %494 = vst [vmem:[#allocation2] sm:$0xff] %v485
        %495 = vst [vmem:[#allocation2 + $0x8] sm:$0xff] %v487
        %496 = vst [vmem:[#allocation2 + $0x10] sm:$0xff] %v490
        %497 = vst [vmem:[#allocation2 + $0x18] sm:$0xff] %v492
        %v498 = vld [vmem:[#allocation4] sm:$0xff]
        %v499 = vld [vmem:[#allocation6] sm:$0xff]
        %501 = vrot.lane.b32.xlu0 %v499, 32
        %v502 = vpop.permute.xlu0 %501
        %v504 = vsel %vm468, %v498, %v502
        %v505 = vld [vmem:[#allocation8] sm:$0xff]
        %v506 = vld [vmem:[#allocation8 + $0x10] sm:$0xff]
        %v507 = vld [vmem:[#allocation8 + $0x20] sm:$0xff]
        %v508 = vld [vmem:[#allocation8 + $0x30] sm:$0xff]
        %v509 = vld [vmem:[#allocation8 + $0x40] sm:$0xff]
        %v510 = vld [vmem:[#allocation8 + $0x50] sm:$0xff]
        %v511 = vld [vmem:[#allocation8 + $0x60] sm:$0xff]
        %v512 = vld [vmem:[#allocation8 + $0x70] sm:$0xff]
        %vm513 = vcmask 523264
        %v515 = vsel %vm513, %v504, 0
        %517 = vmatpush.msra.mxu0 0.0
        %518 = vmatpush.msra.mxu0 0.0
        %519 = vmatpush.msra.mxu0 0.0
        %520 = vmatpush.msra.mxu0 0.0
        %521 = vmatpush.msra.mxu0 0.0
        %522 = vmatpush.msra.mxu0 0.0
        %523 = vmatpush.msra.mxu0 0.0
        %524 = vmatpush.msra.mxu0 0.0
        %525 = vmatpush.msra.mxu0 %v512
        %526 = vmatpush.msra.mxu0 %v511
        %527 = vmatpush.msra.mxu0 %v510
        %528 = vmatpush.msra.mxu0 %v509
        %529 = vmatpush.msra.mxu0 %v508
        %530 = vmatpush.msra.mxu0 %v507
        %531 = vmatpush.msra.mxu0 %v506
        %532 = vmatpush.msra.mxu0 %v505
        %533 = vmatmul.f32.gmra.mxu0 %v515
        %v534 = vpop.f32.mrf.mxu0
        %v535 = vadd.f32 0.0, %v534
        %536 = vdwg.mxu0
        %v537 = vld [vmem:[#allocation2] sm:$0xff]
        %v538 = vadd.f32 %v535, %v537
        %v539 = vtanh.pop %v538
        %v540 = vld [vmem:[#allocation5] sm:$0xff]
        %v541 = vadd.f32 %v539, 1.0
        %v542 = vmul.f32 %v541, 0.5
        %544 = vrot.lane.b32.xlu0 %v540, 32
        %v545 = vpop.permute.xlu0 %544
        %v547 = vmul.f32 %v542, %v545
        %549 = vrot.lane.b32.xlu0 %v539, 64
        %v550 = vpop.permute.xlu0 %549
        %v552 = vmul.f32 %v542, %v550
        %554 = vrot.lane.b32.xlu0 %v552, 32
        %v555 = vpop.permute.xlu0 %554
        %v557 = vadd.f32 %v547, %v555
        %v558 = vtanh.pop %v557
        %560 = vrot.lane.b32.xlu0 %v558, 64
        %v561 = vpop.permute.xlu0 %560
        %v563 = vmul.f32 %v542, %v561
        %565 = vrot.lane.b32.xlu0 %v563, 32
        %v566 = vpop.permute.xlu0 %565
        %568 = vst.msk [vmem:[#allocation4] sm:$0xff] %vm468, %v566
        %570 = vrot.lane.b32.xlu0 %v557, 96
        %v571 = vpop.permute.xlu0 %570
        %573 = vst.msk [vmem:[#allocation5] sm:$0xff] %vm468, %v571
        %v574 = vld [vmem:[#allocation4] sm:$0xff]
        %v575 = vld [vmem:[#allocation6] sm:$0xff]
        %577 = vrot.lane.b32.xlu0 %v575, 32
        %v578 = vpop.permute.xlu0 %577
        %v580 = vsel %vm468, %v574, %v578
        %v581 = vld [vmem:[#allocation8] sm:$0xff]
        %v582 = vld [vmem:[#allocation8 + $0x8] sm:$0xff]
        %v583 = vld [vmem:[#allocation8 + $0x10] sm:$0xff]
        %v584 = vld [vmem:[#allocation8 + $0x18] sm:$0xff]
        %v585 = vld [vmem:[#allocation8 + $0x20] sm:$0xff]
        %v586 = vld [vmem:[#allocation8 + $0x28] sm:$0xff]
        %v587 = vld [vmem:[#allocation8 + $0x30] sm:$0xff]
        %v588 = vld [vmem:[#allocation8 + $0x38] sm:$0xff]
        %v589 = vld [vmem:[#allocation8 + $0x40] sm:$0xff]
        %v590 = vld [vmem:[#allocation8 + $0x48] sm:$0xff]
        %v591 = vld [vmem:[#allocation8 + $0x50] sm:$0xff]
        %v592 = vld [vmem:[#allocation8 + $0x58] sm:$0xff]
        %v593 = vld [vmem:[#allocation8 + $0x60] sm:$0xff]
        %v594 = vld [vmem:[#allocation8 + $0x68] sm:$0xff]
        %v595 = vld [vmem:[#allocation8 + $0x70] sm:$0xff]
        %v596 = vld [vmem:[#allocation8 + $0x78] sm:$0xff]
        %v598 = vsel %vm513, %v580, 0
        %600 = vmatpush.msra.mxu0 0.0
        %601 = vmatpush.msra.mxu0 0.0
        %602 = vmatpush.msra.mxu0 0.0
        %603 = vmatpush.msra.mxu0 0.0
        %604 = vmatpush.msra.mxu0 0.0
        %605 = vmatpush.msra.mxu0 0.0
        %606 = vmatpush.msra.mxu0 0.0
        %607 = vmatpush.msra.mxu0 0.0
        %608 = vmatpush.msra.mxu0 %v595
        %609 = vmatpush.msra.mxu0 %v593
        %610 = vmatpush.msra.mxu0 %v591
        %611 = vmatpush.msra.mxu0 %v589
        %612 = vmatpush.msra.mxu0 %v587
        %613 = vmatpush.msra.mxu0 %v585
        %614 = vmatpush.msra.mxu0 %v583
        %615 = vmatpush.msra.mxu0 %v581
        %616 = vmatmul.f32.gmra.mxu0 %v598
        %v617 = vpop.f32.mrf.mxu0
        %v618 = vadd.f32 0.0, %v617
        %619 = vdwg.mxu0
        %620 = vmatpush.msra.mxu0 0.0
        %621 = vmatpush.msra.mxu0 0.0
        %622 = vmatpush.msra.mxu0 0.0
        %623 = vmatpush.msra.mxu0 0.0
        %624 = vmatpush.msra.mxu0 0.0
        %625 = vmatpush.msra.mxu0 0.0
        %626 = vmatpush.msra.mxu0 0.0
        %627 = vmatpush.msra.mxu0 0.0
        %628 = vmatpush.msra.mxu0 %v596
        %629 = vmatpush.msra.mxu0 %v594
        %630 = vmatpush.msra.mxu0 %v592
        %631 = vmatpush.msra.mxu0 %v590
        %632 = vmatpush.msra.mxu0 %v588
        %633 = vmatpush.msra.mxu0 %v586
        %634 = vmatpush.msra.mxu0 %v584
        %635 = vmatpush.msra.mxu0 %v582
        %636 = vmatmul.f32.gmra.mxu0 %v598
        %v637 = vpop.f32.mrf.mxu0
        %v638 = vadd.f32 0.0, %v637
        %639 = vdwg.mxu0
        %s640 = scalar_lea.vmem [#allocation2], 8
        %v641 = vld [vmem:[%s640] sm:$0xff]
        %v642 = vadd.f32 %v618, %v641
        %v643 = vtanh.pop %v642
        %v644 = vld [vmem:[%s4] sm:$0x1]
        %v646 = vperm.slane %v644, 0
        %v648 = vadd.f32 %v638, %v646
        %v649 = vtanh.pop %v648
        %v650 = vld [vmem:[#allocation5] sm:$0xff]
        %v651 = vadd.f32 %v643, 1.0
        %v652 = vmul.f32 %v651, 0.5
        %654 = vrot.lane.b32.xlu0 %v650, 32
        %v655 = vpop.permute.xlu0 %654
        %v657 = vmul.f32 %v652, %v655
        %659 = vrot.lane.b32.xlu0 %v643, 64
        %v660 = vpop.permute.xlu0 %659
        %v662 = vmul.f32 %v652, %v660
        %664 = vrot.lane.b32.xlu0 %v662, 32
        %v665 = vpop.permute.xlu0 %664
        %v667 = vadd.f32 %v657, %v665
        %v668 = vtanh.pop %v667
        %670 = vrot.lane.b32.xlu0 %v668, 64
        %v671 = vpop.permute.xlu0 %670
        %v673 = vmul.f32 %v652, %v671
        %v674 = vld [vmem:[#allocation7] sm:$0xff]
        %v675 = vadd.f32 %v649, 1.0
        %v676 = vmul.f32 %v675, 0.5
        %678 = vrot.lane.b32.xlu0 %v674, 32
        %v679 = vpop.permute.xlu0 %678
        %v681 = vmul.f32 %v676, %v679
        %683 = vrot.lane.b32.xlu0 %v649, 64
        %v684 = vpop.permute.xlu0 %683
        %v686 = vmul.f32 %v676, %v684
        %688 = vrot.lane.b32.xlu0 %v686, 32
        %v689 = vpop.permute.xlu0 %688
        %v691 = vadd.f32 %v681, %v689
        %v692 = vtanh.pop %v691
        %694 = vrot.lane.b32.xlu0 %v692, 64
        %v695 = vpop.permute.xlu0 %694
        %v697 = vmul.f32 %v676, %v695
        %699 = vrot.lane.b32.xlu0 %v673, 32
        %v700 = vpop.permute.xlu0 %699
        %702 = vst.msk [vmem:[#allocation4] sm:$0xff] %vm468, %v700
        %704 = vrot.lane.b32.xlu0 %v667, 96
        %v705 = vpop.permute.xlu0 %704
        %707 = vst.msk [vmem:[#allocation5] sm:$0xff] %vm468, %v705
        %709 = vrot.lane.b32.xlu0 %v697, 32
        %v710 = vpop.permute.xlu0 %709
        %712 = vst.msk [vmem:[#allocation6] sm:$0xff] %vm468, %v710
        %714 = vrot.lane.b32.xlu0 %v691, 96
        %v715 = vpop.permute.xlu0 %714
        %717 = vst.msk [vmem:[#allocation7] sm:$0xff] %vm468, %v715
        %718 = vst.msk [vmem:[#allocation3] sm:$0xff] %vm468, %v710
        %v719 = vld [vmem:[#allocation4] sm:$0xff]
        %v720 = vld [vmem:[#allocation6] sm:$0xff]
        %722 = vrot.lane.b32.xlu0 %v720, 32
        %v723 = vpop.permute.xlu0 %722
        %v725 = vsel %vm468, %v719, %v723
        %v726 = vld [vmem:[#allocation8] sm:$0xff]
        %v727 = vld [vmem:[#allocation8 + $0x8] sm:$0xff]
        %v728 = vld [vmem:[#allocation8 + $0x10] sm:$0xff]
        %v729 = vld [vmem:[#allocation8 + $0x18] sm:$0xff]
        %v730 = vld [vmem:[#allocation8 + $0x20] sm:$0xff]
        %v731 = vld [vmem:[#allocation8 + $0x28] sm:$0xff]
        %v732 = vld [vmem:[#allocation8 + $0x30] sm:$0xff]
        %v733 = vld [vmem:[#allocation8 + $0x38] sm:$0xff]
        %v734 = vld [vmem:[#allocation8 + $0x40] sm:$0xff]
        %v735 = vld [vmem:[#allocation8 + $0x48] sm:$0xff]
        %v736 = vld [vmem:[#allocation8 + $0x50] sm:$0xff]
        %v737 = vld [vmem:[#allocation8 + $0x58] sm:$0xff]
        %v738 = vld [vmem:[#allocation8 + $0x60] sm:$0xff]
        %v739 = vld [vmem:[#allocation8 + $0x68] sm:$0xff]
        %v740 = vld [vmem:[#allocation8 + $0x70] sm:$0xff]
        %v741 = vld [vmem:[#allocation8 + $0x78] sm:$0xff]
        %v743 = vsel %vm513, %v725, 0
        %745 = vmatpush.msra.mxu0 0.0
        %746 = vmatpush.msra.mxu0 0.0
        %747 = vmatpush.msra.mxu0 0.0
        %748 = vmatpush.msra.mxu0 0.0
        %749 = vmatpush.msra.mxu0 0.0
        %750 = vmatpush.msra.mxu0 0.0
        %751 = vmatpush.msra.mxu0 0.0
        %752 = vmatpush.msra.mxu0 0.0
        %753 = vmatpush.msra.mxu0 %v740
        %754 = vmatpush.msra.mxu0 %v738
        %755 = vmatpush.msra.mxu0 %v736
        %756 = vmatpush.msra.mxu0 %v734
        %757 = vmatpush.msra.mxu0 %v732
        %758 = vmatpush.msra.mxu0 %v730
        %759 = vmatpush.msra.mxu0 %v728
        %760 = vmatpush.msra.mxu0 %v726
        %761 = vmatmul.f32.gmra.mxu0 %v743
        %v762 = vpop.f32.mrf.mxu0
        %v763 = vadd.f32 0.0, %v762
        %764 = vdwg.mxu0
        %765 = vmatpush.msra.mxu0 0.0
        %766 = vmatpush.msra.mxu0 0.0
        %767 = vmatpush.msra.mxu0 0.0
        %768 = vmatpush.msra.mxu0 0.0
        %769 = vmatpush.msra.mxu0 0.0
        %770 = vmatpush.msra.mxu0 0.0
        %771 = vmatpush.msra.mxu0 0.0
        %772 = vmatpush.msra.mxu0 0.0
        %773 = vmatpush.msra.mxu0 %v741
        %774 = vmatpush.msra.mxu0 %v739
        %775 = vmatpush.msra.mxu0 %v737
        %776 = vmatpush.msra.mxu0 %v735
        %777 = vmatpush.msra.mxu0 %v733
        %778 = vmatpush.msra.mxu0 %v731
        %779 = vmatpush.msra.mxu0 %v729
        %780 = vmatpush.msra.mxu0 %v727
        %781 = vmatmul.f32.gmra.mxu0 %v743
        %v782 = vpop.f32.mrf.mxu0
        %v783 = vadd.f32 0.0, %v782
        %784 = vdwg.mxu0
        %s785 = scalar_lea.vmem [#allocation2], 16
        %v786 = vld [vmem:[%s785] sm:$0xff]
        %v787 = vadd.f32 %v763, %v786
        %v788 = vtanh.pop %v787
        %v789 = vld [vmem:[%s4] sm:$0x1]
        %v791 = vperm.slane %v789, 0
        %v793 = vadd.f32 %v783, %v791
        %v794 = vtanh.pop %v793
        %v795 = vld [vmem:[#allocation5] sm:$0xff]
        %v796 = vadd.f32 %v788, 1.0
        %v797 = vmul.f32 %v796, 0.5
        %799 = vrot.lane.b32.xlu0 %v795, 32
        %v800 = vpop.permute.xlu0 %799
        %v802 = vmul.f32 %v797, %v800
        %804 = vrot.lane.b32.xlu0 %v788, 64
        %v805 = vpop.permute.xlu0 %804
        %v807 = vmul.f32 %v797, %v805
        %809 = vrot.lane.b32.xlu0 %v807, 32
        %v810 = vpop.permute.xlu0 %809
        %v812 = vadd.f32 %v802, %v810
        %v813 = vtanh.pop %v812
        %815 = vrot.lane.b32.xlu0 %v813, 64
        %v816 = vpop.permute.xlu0 %815
        %v818 = vmul.f32 %v797, %v816
        %v819 = vld [vmem:[#allocation7] sm:$0xff]
        %v820 = vadd.f32 %v794, 1.0
        %v821 = vmul.f32 %v820, 0.5
        %823 = vrot.lane.b32.xlu0 %v819, 32
        %v824 = vpop.permute.xlu0 %823
        %v826 = vmul.f32 %v821, %v824
        %828 = vrot.lane.b32.xlu0 %v794, 64
        %v829 = vpop.permute.xlu0 %828
        %v831 = vmul.f32 %v821, %v829
        %833 = vrot.lane.b32.xlu0 %v831, 32
        %v834 = vpop.permute.xlu0 %833
        %v836 = vadd.f32 %v826, %v834
        %v837 = vtanh.pop %v836
        %839 = vrot.lane.b32.xlu0 %v837, 64
        %v840 = vpop.permute.xlu0 %839
        %v842 = vmul.f32 %v821, %v840
        %844 = vrot.lane.b32.xlu0 %v818, 32
        %v845 = vpop.permute.xlu0 %844
        %847 = vst.msk [vmem:[#allocation4] sm:$0xff] %vm468, %v845
        %849 = vrot.lane.b32.xlu0 %v812, 96
        %v850 = vpop.permute.xlu0 %849
        %852 = vst.msk [vmem:[#allocation5] sm:$0xff] %vm468, %v850
        %854 = vrot.lane.b32.xlu0 %v842, 32
        %v855 = vpop.permute.xlu0 %854
        %857 = vst.msk [vmem:[#allocation6] sm:$0xff] %vm468, %v855
        %859 = vrot.lane.b32.xlu0 %v836, 96
        %v860 = vpop.permute.xlu0 %859
        %862 = vst.msk [vmem:[#allocation7] sm:$0xff] %vm468, %v860
        %s863 = scalar_lea.vmem [#allocation3], 8
        %864 = vst.msk [vmem:[%s863] sm:$0xff] %vm468, %v855
        %v865 = vld [vmem:[#allocation4] sm:$0xff]
        %v866 = vld [vmem:[#allocation6] sm:$0xff]
        %868 = vrot.lane.b32.xlu0 %v866, 32
        %v869 = vpop.permute.xlu0 %868
        %v871 = vsel %vm468, %v865, %v869
        %v872 = vld [vmem:[#allocation8] sm:$0xff]
        %v873 = vld [vmem:[#allocation8 + $0x8] sm:$0xff]
        %v874 = vld [vmem:[#allocation8 + $0x10] sm:$0xff]
        %v875 = vld [vmem:[#allocation8 + $0x18] sm:$0xff]
        %v876 = vld [vmem:[#allocation8 + $0x20] sm:$0xff]
        %v877 = vld [vmem:[#allocation8 + $0x28] sm:$0xff]
        %v878 = vld [vmem:[#allocation8 + $0x30] sm:$0xff]
        %v879 = vld [vmem:[#allocation8 + $0x38] sm:$0xff]
        %v880 = vld [vmem:[#allocation8 + $0x40] sm:$0xff]
        %v881 = vld [vmem:[#allocation8 + $0x48] sm:$0xff]
        %v882 = vld [vmem:[#allocation8 + $0x50] sm:$0xff]
        %v883 = vld [vmem:[#allocation8 + $0x58] sm:$0xff]
        %v884 = vld [vmem:[#allocation8 + $0x60] sm:$0xff]
        %v885 = vld [vmem:[#allocation8 + $0x68] sm:$0xff]
        %v886 = vld [vmem:[#allocation8 + $0x70] sm:$0xff]
        %v887 = vld [vmem:[#allocation8 + $0x78] sm:$0xff]
        %v889 = vsel %vm513, %v871, 0
        %891 = vmatpush.msra.mxu0 0.0
        %892 = vmatpush.msra.mxu0 0.0
        %893 = vmatpush.msra.mxu0 0.0
        %894 = vmatpush.msra.mxu0 0.0
        %895 = vmatpush.msra.mxu0 0.0
        %896 = vmatpush.msra.mxu0 0.0
        %897 = vmatpush.msra.mxu0 0.0
        %898 = vmatpush.msra.mxu0 0.0
        %899 = vmatpush.msra.mxu0 %v886
        %900 = vmatpush.msra.mxu0 %v884
        %901 = vmatpush.msra.mxu0 %v882
        %902 = vmatpush.msra.mxu0 %v880
        %903 = vmatpush.msra.mxu0 %v878
        %904 = vmatpush.msra.mxu0 %v876
        %905 = vmatpush.msra.mxu0 %v874
        %906 = vmatpush.msra.mxu0 %v872
        %907 = vmatmul.f32.gmra.mxu0 %v889
        %v908 = vpop.f32.mrf.mxu0
        %v909 = vadd.f32 0.0, %v908
        %910 = vdwg.mxu0
        %911 = vmatpush.msra.mxu0 0.0
        %912 = vmatpush.msra.mxu0 0.0
        %913 = vmatpush.msra.mxu0 0.0
        %914 = vmatpush.msra.mxu0 0.0
        %915 = vmatpush.msra.mxu0 0.0
        %916 = vmatpush.msra.mxu0 0.0
        %917 = vmatpush.msra.mxu0 0.0
        %918 = vmatpush.msra.mxu0 0.0
        %919 = vmatpush.msra.mxu0 %v887
        %920 = vmatpush.msra.mxu0 %v885
        %921 = vmatpush.msra.mxu0 %v883
        %922 = vmatpush.msra.mxu0 %v881
        %923 = vmatpush.msra.mxu0 %v879
        %924 = vmatpush.msra.mxu0 %v877
        %925 = vmatpush.msra.mxu0 %v875
        %926 = vmatpush.msra.mxu0 %v873
        %927 = vmatmul.f32.gmra.mxu0 %v889
        %v928 = vpop.f32.mrf.mxu0
        %v929 = vadd.f32 0.0, %v928
        %930 = vdwg.mxu0
        %s931 = scalar_lea.vmem [#allocation2], 24
        %v932 = vld [vmem:[%s931] sm:$0xff]
        %v933 = vadd.f32 %v909, %v932
        %v934 = vtanh.pop %v933
        %v935 = vld [vmem:[%s4] sm:$0x1]
        %v937 = vperm.slane %v935, 0
        %v939 = vadd.f32 %v929, %v937
        %v940 = vtanh.pop %v939
        %v941 = vld [vmem:[#allocation5] sm:$0xff]
        %v942 = vadd.f32 %v934, 1.0
        %v943 = vmul.f32 %v942, 0.5
        %945 = vrot.lane.b32.xlu0 %v941, 32
        %v946 = vpop.permute.xlu0 %945
        %v948 = vmul.f32 %v943, %v946
        %950 = vrot.lane.b32.xlu0 %v934, 64
        %v951 = vpop.permute.xlu0 %950
        %v953 = vmul.f32 %v943, %v951
        %955 = vrot.lane.b32.xlu0 %v953, 32
        %v956 = vpop.permute.xlu0 %955
        %v958 = vadd.f32 %v948, %v956
        %v959 = vtanh.pop %v958
        %961 = vrot.lane.b32.xlu0 %v959, 64
        %v962 = vpop.permute.xlu0 %961
        %v964 = vmul.f32 %v943, %v962
        %v965 = vld [vmem:[#allocation7] sm:$0xff]
        %v966 = vadd.f32 %v940, 1.0
        %v967 = vmul.f32 %v966, 0.5
        %969 = vrot.lane.b32.xlu0 %v965, 32
        %v970 = vpop.permute.xlu0 %969
        %v972 = vmul.f32 %v967, %v970
        %974 = vrot.lane.b32.xlu0 %v940, 64
        %v975 = vpop.permute.xlu0 %974
        %v977 = vmul.f32 %v967, %v975
        %979 = vrot.lane.b32.xlu0 %v977, 32
        %v980 = vpop.permute.xlu0 %979
        %v982 = vadd.f32 %v972, %v980
        %v983 = vtanh.pop %v982
        %985 = vrot.lane.b32.xlu0 %v983, 64
        %v986 = vpop.permute.xlu0 %985
        %v988 = vmul.f32 %v967, %v986
        %990 = vrot.lane.b32.xlu0 %v964, 32
        %v991 = vpop.permute.xlu0 %990
        %993 = vst.msk [vmem:[#allocation4] sm:$0xff] %vm468, %v991
        %995 = vrot.lane.b32.xlu0 %v958, 96
        %v996 = vpop.permute.xlu0 %995
        %998 = vst.msk [vmem:[#allocation5] sm:$0xff] %vm468, %v996
        %1000 = vrot.lane.b32.xlu0 %v988, 32
        %v1001 = vpop.permute.xlu0 %1000
        %1003 = vst.msk [vmem:[#allocation6] sm:$0xff] %vm468, %v1001
        %1005 = vrot.lane.b32.xlu0 %v982, 96
        %v1006 = vpop.permute.xlu0 %1005
        %1008 = vst.msk [vmem:[#allocation7] sm:$0xff] %vm468, %v1006
        %s1009 = scalar_lea.vmem [#allocation3], 16
        %1010 = vst.msk [vmem:[%s1009] sm:$0xff] %vm468, %v1001
        %v1011 = vld [vmem:[#allocation4] sm:$0xff]
        %v1012 = vld [vmem:[#allocation6] sm:$0xff]
        %1014 = vrot.lane.b32.xlu0 %v1012, 32
        %v1015 = vpop.permute.xlu0 %1014
        %v1017 = vsel %vm468, %v1011, %v1015
        %v1018 = vld [vmem:[#allocation8 + $0x8] sm:$0xff]
        %v1019 = vld [vmem:[#allocation8 + $0x18] sm:$0xff]
        %v1020 = vld [vmem:[#allocation8 + $0x28] sm:$0xff]
        %v1021 = vld [vmem:[#allocation8 + $0x38] sm:$0xff]
        %v1022 = vld [vmem:[#allocation8 + $0x48] sm:$0xff]
        %v1023 = vld [vmem:[#allocation8 + $0x58] sm:$0xff]
        %v1024 = vld [vmem:[#allocation8 + $0x68] sm:$0xff]
        %v1025 = vld [vmem:[#allocation8 + $0x78] sm:$0xff]
        %v1027 = vsel %vm513, %v1017, 0
        %1029 = vmatpush.msra.mxu0 0.0
        %1030 = vmatpush.msra.mxu0 0.0
        %1031 = vmatpush.msra.mxu0 0.0
        %1032 = vmatpush.msra.mxu0 0.0
        %1033 = vmatpush.msra.mxu0 0.0
        %1034 = vmatpush.msra.mxu0 0.0
        %1035 = vmatpush.msra.mxu0 0.0
        %1036 = vmatpush.msra.mxu0 0.0
        %1037 = vmatpush.msra.mxu0 %v1025
        %1038 = vmatpush.msra.mxu0 %v1024
        %1039 = vmatpush.msra.mxu0 %v1023
        %1040 = vmatpush.msra.mxu0 %v1022
        %1041 = vmatpush.msra.mxu0 %v1021
        %1042 = vmatpush.msra.mxu0 %v1020
        %1043 = vmatpush.msra.mxu0 %v1019
        %1044 = vmatpush.msra.mxu0 %v1018
        %1045 = vmatmul.f32.gmra.mxu0 %v1027
        %v1046 = vpop.f32.mrf.mxu0
        %v1047 = vadd.f32 0.0, %v1046
        %1048 = vdwg.mxu0
        %v1049 = vld [vmem:[%s4] sm:$0x1]
        %v1051 = vperm.slane %v1049, 0
        %v1053 = vadd.f32 %v1047, %v1051
        %v1054 = vtanh.pop %v1053
        %v1055 = vld [vmem:[#allocation7] sm:$0xff]
        %v1056 = vadd.f32 %v1054, 1.0
        %v1057 = vmul.f32 %v1056, 0.5
        %1059 = vrot.lane.b32.xlu0 %v1055, 32
        %v1060 = vpop.permute.xlu0 %1059
        %v1062 = vmul.f32 %v1057, %v1060
        %1064 = vrot.lane.b32.xlu0 %v1054, 64
        %v1065 = vpop.permute.xlu0 %1064
        %v1067 = vmul.f32 %v1057, %v1065
        %1069 = vrot.lane.b32.xlu0 %v1067, 32
        %v1070 = vpop.permute.xlu0 %1069
        %v1072 = vadd.f32 %v1062, %v1070
        %v1073 = vtanh.pop %v1072
        %1075 = vrot.lane.b32.xlu0 %v1073, 64
        %v1076 = vpop.permute.xlu0 %1075
        %v1078 = vmul.f32 %v1057, %v1076
        %1080 = vrot.lane.b32.xlu0 %v1078, 32
        %v1081 = vpop.permute.xlu0 %1080
        %1083 = vst.msk [vmem:[#allocation6] sm:$0xff] %vm468, %v1081
        %1085 = vrot.lane.b32.xlu0 %v1072, 96
        %v1086 = vpop.permute.xlu0 %1085
        %1088 = vst.msk [vmem:[#allocation7] sm:$0xff] %vm468, %v1086
        %1089 = vst.msk [vmem:[#allocation3 + $0x18] sm:$0xff] %vm468, %v1081
        %v1090 = vld [vmem:[#allocation3] sm:$0xff]
        %v1091 = vld [vmem:[#allocation3 + $0x8] sm:$0xff]
        %v1092 = vld [vmem:[#allocation3 + $0x10] sm:$0xff]
        %v1093 = vld [vmem:[#allocation3 + $0x18] sm:$0xff]
        %v1094 = vpack.c.bf16 %v1091, %v1090
        %v1095 = vpack.c.bf16 %v1093, %v1092
        %v1096 = vld [vmem:[%s5] sm:$0xf]
        %v1097 = vld [vmem:[%s5 + $0x4] sm:$0xf]
        %v1098 = vld [vmem:[%s5 + $0x8] sm:$0xf]
        %v1099 = vld [vmem:[%s5 + $0xc] sm:$0xf]
        %v1100 = vld [vmem:[%s6] sm:$0x1]
        %v1102 = vperm.slane %v1100, 0
        %v1108 = vunpack.c.l.b16 %v1096
        %v1109 = vunpack.c.l.b16 %v1097
        %v1110 = vunpack.c.l.b16 %v1098
        %v1111 = vunpack.c.l.b16 %v1099
        %v1112 = vpack.c.b16 %v1109, %v1108
        %v1113 = vpack.c.b16 %v1111, %v1110
        %v1117 = vsel %vm468, %v1094, 0
        %v1120 = vsel %vm468, %v1095, 0
        %1122 = vmatpush.bf16.msra.mxu0 0
        %1123 = vmatpush.bf16.msra.mxu0 0
        %1124 = vmatpush.bf16.msra.mxu0 0
        %1125 = vmatpush.bf16.msra.mxu0 0
        %1126 = vmatpush.bf16.msra.mxu0 0
        %1127 = vmatpush.bf16.msra.mxu0 0
        %1128 = vmatpush.bf16.msra.mxu0 %v1113
        %1129 = vmatpush.bf16.msra.mxu0 %v1112
        %1130 = vmatmul.bf16.gmra.mxu0 %v1117
        %v1131 = vpop.f32.mrf.mxu0
        %v1132 = vadd.f32 %v1102, %v1131
        %v1133 = vpop.f32.mrf.mxu0
        %v1134 = vadd.f32 %v1102, %v1133
        %1135 = vmatmul.bf16.gmra.mxu0 %v1120
        %v1136 = vpop.f32.mrf.mxu0
        %v1137 = vadd.f32 %v1102, %v1136
        %v1138 = vpop.f32.mrf.mxu0
        %v1139 = vadd.f32 %v1102, %v1138
        %1140 = vdwg.mxu0
        %1141 = vst [vmem:[%s406] sm:$0xff] %v1132
        %1142 = vst [vmem:[%s406 + $0x8] sm:$0xff] %v1134
        %1143 = vst [vmem:[%s406 + $0x10] sm:$0xff] %v1137
        %1144 = vst [vmem:[%s406 + $0x18] sm:$0xff] %v1139
        %v1145 = vld [vmem:[#allocation4] sm:$0xff]
        %1146 = vst.msk [vmem:[#allocation14] sm:$0xff] %vm468, %v1145
        %v1147 = vld [vmem:[#allocation6] sm:$0xff]
        %s1148 = scalar_lea.vmem [#allocation14], 8
        %1149 = vst.msk [vmem:[%s1148] sm:$0xff] %vm468, %v1147
        %v1150 = vld [vmem:[#allocation5] sm:$0xff]
        %1151 = vst.msk [vmem:[#allocation16] sm:$0xff] %vm468, %v1150
        %v1152 = vld [vmem:[#allocation7] sm:$0xff]
        %s1153 = scalar_lea.vmem [#allocation16], 8
        %1154 = vst.msk [vmem:[%s1153] sm:$0xff] %vm468, %v1152
        %s1155 = sand.u32 %s231, 1
        %s1156 = scalar_lea.sflag [#allocation10], %s1155
        %s1157 = sand.u32 %s231, 1
        %s1158 = smul.addr %s1157, 32
        %s1159 = scalar_lea.vmem [#allocation13], %s1158
        // Predicated region
        $region69: #{tpu_custom_call.1} parent=55 // pred_check
          %p1160 = pneg %p241
        $region70: #{tpu_custom_call.1} parent=55 // pred_check_branch
          %1162 = sbr.rel (%p1160) target = $region72
        $region71: #{tpu_custom_call.1} parent=55 // pred_region
          %s1163 = smul.u32 4, %s29
          %1165 = vsyncadd %s1156, 0
          %s1166 = smul.addr %s1163, 8
          %s1167 = scalar_lea.hbm %s9, %s1166
          %s1168 = sshll.u32 %s1159, 4
          %s1169 = int_to_ptr.vmem [resolvable:$true] %s1168
          %s1170 = sshll.u32 %s1167, 4
          %s1171 = int_to_ptr.hbm [resolvable:$true] %s1170
          %1176 = dma.vmem_to_hbm [thread:$0]  %s1169, 512, %s1171, %s1156, 128, 128, 8
        $region72: #{tpu_custom_call.1} parent=55 // pred_fallthru
          _
        // Predicated region
        $region73: #{tpu_custom_call.1} parent=55 // pred_check
          %p1177 = pneg %p262
        $region74: #{tpu_custom_call.1} parent=55 // pred_check_branch
          %1179 = sbr.rel (%p1177) target = $region76
        $region75: #{tpu_custom_call.1} parent=55 // pred_region
          %1181 = vsyncadd [#allocation15], 0
          %s1182 = sshll.u32 [#allocation14], 4
          %s1183 = int_to_ptr.vmem [resolvable:$true] %s1182
          %s1184 = sshll.u32 %s10, 4
          %s1185 = int_to_ptr.hbm [resolvable:$true] %s1184
          %1190 = dma.vmem_to_hbm [thread:$0]  %s1183, 256, %s1185, [#allocation15], 128, 128, 8
        $region76: #{tpu_custom_call.1} parent=55 // pred_fallthru
          _
        // Predicated region
        $region77: #{tpu_custom_call.1} parent=55 // pred_check
          %p1191 = pneg %p283
        $region78: #{tpu_custom_call.1} parent=55 // pred_check_branch
          %1193 = sbr.rel (%p1191) target = $region80
        $region79: #{tpu_custom_call.1} parent=55 // pred_region
          %1195 = vsyncadd [#allocation15], 0
          %s1196 = sshll.u32 [#allocation16], 4
          %s1197 = int_to_ptr.vmem [resolvable:$true] %s1196
          %s1198 = sshll.u32 %s11, 4
          %s1199 = int_to_ptr.hbm [resolvable:$true] %s1198
          %1204 = dma.vmem_to_hbm [thread:$0]  %s1197, 256, %s1199, [#allocation15], 128, 128, 8
        $region80: #{tpu_custom_call.1} parent=55 // pred_fallthru
          _
        // Predicated region
        $region81: #{tpu_custom_call.1} parent=55 // pred_check
          %p1205 = pneg %p262
        $region82: #{tpu_custom_call.1} parent=55 // pred_check_branch
          %1207 = sbr.rel (%p1205) target = $region84
        $region83: #{tpu_custom_call.1} parent=55 // pred_region
          %1209 = dma.done [#allocation15], 256
        $region84: #{tpu_custom_call.1} parent=55 // pred_fallthru
          _
        // Predicated region
        $region85: #{tpu_custom_call.1} parent=55 // pred_check
          %p1210 = pneg %p283
        $region86: #{tpu_custom_call.1} parent=55 // pred_check_branch
          %1212 = sbr.rel (%p1210) target = $region88
        $region87: #{tpu_custom_call.1} parent=55 // pred_region
          %1214 = dma.done [#allocation15], 256
        $region88: #{tpu_custom_call.1} parent=55 // pred_fallthru
          _
      $region56: #{tpu_custom_call.1} parent=5 // pred_fallthru
        _
      %p1215 = scmp.le.s32.totalorder 2, %s24
      // Predicated region
      $region89: #{tpu_custom_call.1} parent=5 // pred_check
        %p1216 = pneg %p1215
      $region90: #{tpu_custom_call.1} parent=5 // pred_check_branch
        %1218 = sbr.rel (%p1216) target = $region92
      $region91: #{tpu_custom_call.1} parent=5 // pred_region
        %s1219 = ssub.s32 %s24, 2
        // Predicated region
        $region93: #{tpu_custom_call.1} parent=91 // pred_check
          %p1220 = pneg %p247
        $region94: #{tpu_custom_call.1} parent=91 // pred_check_branch
          %1222 = sbr.rel (%p1220) target = $region96
        $region95: #{tpu_custom_call.1} parent=91 // pred_region
          %s1223 = sand.u32 %s232, 1
          %s1224 = scalar_lea.sflag [#allocation10], %s1223
          %s1225 = sand.u32 %s232, 1
          %s1226 = smul.addr %s1225, 32
          %s1227 = scalar_lea.vmem [#allocation13], %s1226
          %1229 = dma.done %s1224, 512
        $region96: #{tpu_custom_call.1} parent=91 // pred_fallthru
          _
      $region92: #{tpu_custom_call.1} parent=5 // pred_fallthru
        _
    $region6: #{tpu_custom_call.1} parent=1 // loop_footer
      %s28 = sadd.s32 1, %s24
    $region7: #{tpu_custom_call.1} parent=1 // loop_footer_branch
      %23 = sbr.rel target = $region3
    $region8: #{tpu_custom_call.1} parent=1 // loop_exit
      _
    %1230 = vsyncpa [#allocation9], 1
    %s1231 = scalar_lea.sflag [#allocation9], 1
    %1232 = vsyncpa %s1231, 1
    %1233 = vsyncpa [#allocation12], 1
    %1234 = vsyncpa [#allocation10], 1
    %s1235 = scalar_lea.sflag [#allocation10], 1
    %1236 = vsyncpa %s1235, 1
    %1237 = vsyncpa [#allocation15], 1

</llo_original>
